<compile_context>
chip_gen: v7x
topology: tpu7x:2x2x1
jax: 0.10.0
libtpu: 0.0.40
codegen_flags: <defaults>
</compile_context>

<pallas_src>
import jax
import jax.numpy as jnp
from jax import lax
from jax.experimental import pallas as pl
from jax.experimental.pallas import tpu as pltpu


# ---------------------------------------------------------------------------
# Fused kernel: conv(3x3,'same') + bias + ReLU -> NCHW flatten ->
#               (PCA folded into) KMeans.predict
# ---------------------------------------------------------------------------
def _make_fused_kernel(block_n, s2, out_ch, num_clusters):
    def kernel(xs_ref, w_ref, b_ref, m_ref, cc2_ref, o_ref, conv_ref, feat_ref):
        # ---- Conv2d + bias + ReLU as ONE (O, 9C) @ (9C, B*S) GEMM ----------
        # xs_ref : (9C, B*S)  stacked shifted tap slices (lane-dense)
        # w_ref  : (O, 9C)    conv weights, tap-major / channel-minor
        conv_ref[...] = jnp.maximum(
            jnp.dot(w_ref[...], xs_ref[...],
                    preferred_element_type=jnp.float32) + b_ref[...],
            0.0)                                                  # (O, B*S)

        # ---- flatten to PyTorch NCHW feature order --------------------------
        # feat[b, o*S:(o+1)*S] = conv[o, b*S:(b+1)*S]; S = H*W is a multiple
        # of 128, so every slice/store is 128-lane aligned.
        if block_n <= 16:
            # small blocks: fully static, unrolled copies
            for b in range(block_n):
                for o in range(out_ch):
                    feat_ref[b:b + 1, o * s2:(o + 1) * s2] = \
                        conv_ref[o:o + 1, b * s2:(b + 1) * s2]
        else:
            # large blocks: bounded code size (per v5e guidance)
            @pl.loop(0, block_n)
            def _(b):
                off = b * s2
                if s2 % 128 == 0:
                    off = pl.multiple_of(off, 128)
                for o in range(out_ch):
                    feat_ref[pl.ds(b, 1), o * s2:(o + 1) * s2] = \
                        conv_ref[o:o + 1, pl.ds(off, s2)]

        # ---- KMeans.predict with PCA folded in -------------------------------
        #   argmin_k ||(x - mean) @ comps^T - c_k||^2
        # = argmin_k ||c_k||^2 + 2*mean@(comps^T c_k) - 2*x@(comps^T c_k)
        # = argmin_k (cc2 - 2 * feat @ M)
        d2 = cc2_ref[...] - 2.0 * jnp.dot(feat_ref[...], m_ref[...],
                                          preferred_element_type=jnp.float32)
        idx = lax.broadcasted_iota(jnp.int32, d2.shape, 1)
        min_d = jnp.min(d2, axis=-1, keepdims=True)
        cand = jnp.where(d2 == min_d, idx, num_clusters)   # first-index tie-break
        lab = jnp.min(cand, axis=-1, keepdims=True)        # (B, 1) int32
        o_ref[...] = jnp.transpose(lab, (1, 0))            # lane-dense (1, B)

    return kernel


# ---------------------------------------------------------------------------
# One-time parameter preparation (outside the jitted forward)
# ---------------------------------------------------------------------------
def prepare_params(conv_w, conv_b, pca_components, pca_mean, km_centers):
    out_ch, in_ch, kh, kw = conv_w.shape
    assert (kh, kw) == (3, 3)
    num_clusters = km_centers.shape[0]

    # (O, 9C): tap-major / channel-minor, matching the stacked input slices.
    w_stack = jnp.transpose(conv_w, (0, 2, 3, 1)).reshape(out_ch, 9 * in_ch)
    b = conv_b.reshape(out_ch, 1)

    # Fold PCA into the KMeans distance (everything after ReLU is linear).
    m = pca_components.T @ km_centers.T                            # (F, K)
    cc2 = (jnp.sum(km_centers * km_centers, axis=1)
           + 2.0 * (pca_mean @ m)).reshape(1, num_clusters)        # (1, K)

    return {"w_stack": w_stack, "b": b, "m": m, "cc2": cc2}


# ---------------------------------------------------------------------------
# Input-side prep (tiny): stack the 9 shifted 3x3 tap slices -> (9C, N*H*W)
# ---------------------------------------------------------------------------
def _build_x_stack(x):
    n, c, h, w = x.shape
    s2 = h * w
    xp = jnp.pad(x, ((0, 0), (0, 0), (1, 1), (1, 1)))        # (N, C, H+2, W+2)
    taps = [xp[:, :, dh:dh + h, dw:dw + w]                   # (N, C, H, W)
            for dh in range(3) for dw in range(3)]
    xs = jnp.stack(taps, axis=1)                             # (N, 9, C, H, W)
    xs = xs.reshape(n, 9 * c, s2)                            # (N, 9C, S)
    return jnp.transpose(xs, (1, 0, 2)).reshape(9 * c, n * s2)


# ---------------------------------------------------------------------------
# Forward pass
# ---------------------------------------------------------------------------
def clustering_model_forward(x, prep, *, max_block=128):
    n, c, h, w = x.shape
    out_ch = prep["w_stack"].shape[0]
    feat_dim, num_clusters = prep["m"].shape
    s2 = h * w
    assert feat_dim == out_ch * s2

    block_n = n if n <= max_block else max_block
    n_pad = int(pl.cdiv(n, block_n)) * block_n
    if n_pad != n:
        x = jnp.pad(x, ((0, n_pad - n), (0, 0), (0, 0), (0, 0)))

    xs = _build_x_stack(x)                                   # (9C, n_pad*S)
    kernel = _make_fused_kernel(block_n, s2, out_ch, num_clusters)

    labels2d = pl.pallas_call(
        kernel,
        out_shape=jax.ShapeDtypeStruct((1, n_pad), jnp.int32),
        grid_spec=pltpu.PrefetchScalarGridSpec(
            num_scalar_prefetch=0,
            grid=(n_pad // block_n,),
            in_specs=[
                pl.BlockSpec((9 * c, block_n * s2), lambda i: (0, i)),   # streamed
                pl.BlockSpec((out_ch, 9 * c), lambda i: (0, 0)),         # resident
                pl.BlockSpec((out_ch, 1), lambda i: (0, 0)),             # resident
                pl.BlockSpec((feat_dim, num_clusters), lambda i: (0, 0)),# resident
                pl.BlockSpec((1, num_clusters), lambda i: (0, 0)),       # resident
            ],
            out_specs=pl.BlockSpec((1, block_n), lambda i: (0, i)),
            scratch_shapes=[
                pltpu.VMEM((out_ch, block_n * s2), jnp.float32),  # conv output
                pltpu.VMEM((block_n, feat_dim), jnp.float32),     # NCHW features
            ],
        ),
        compiler_params=pltpu.CompilerParams(
            dimension_semantics=("parallel",)),
    )(xs, prep["w_stack"], prep["b"], prep["m"], prep["cc2"])

    return labels2d[0, :n]


# ---------------------------------------------------------------------------
# Demo / self-check
# ---------------------------------------------------------------------------
if __name__ == "__main__":
    N, C, H, W = 2, 4, 16, 16
    OUT_CH = 8
    FEAT = OUT_CH * H * W          # 2048
    N_COMP = 32
    N_CLUSTERS = 10

    key = jax.random.PRNGKey(0)
    kx, kwt, kb, kc, kmn, kk = jax.random.split(key, 6)

    x = jax.random.normal(kx, (N, C, H, W), dtype=jnp.float32)
    conv_w = 0.1 * jax.random.normal(kwt, (OUT_CH, C, 3, 3), dtype=jnp.float32)
    conv_b = 0.1 * jax.random.normal(kb, (OUT_CH,), dtype=jnp.float32)
    pca_components = (jax.random.normal(kc, (N_COMP, FEAT), dtype=jnp.float32)
                      / jnp.sqrt(FEAT))
    pca_mean = jax.random.normal(kmn, (FEAT,), dtype=jnp.float32)
    km_centers = jax.random.normal(kk, (N_CLUSTERS, N_COMP), dtype=jnp.float32)

    prep = prepare_params(conv_w, conv_b, pca_components, pca_mean, km_centers)

    fwd = jax.jit(clustering_model_forward)
    labels = fwd(x, prep)
    jax.block_until_ready(labels)

    # pure-JAX reference with identical semantics to the PyTorch module
    conv_ref_out = lax.conv_general_dilated(
        x, conv_w, window_strides=(1, 1), padding="SAME",
        dimension_numbers=("NCHW", "OIHW", "NCHW"))
    l1 = jnp.maximum(conv_ref_out + conv_b.reshape(1, OUT_CH, 1, 1), 0.0)
    l1 = l1.reshape(N, FEAT)                                   # NCHW flatten
    l2 = (l1 - pca_mean[None, :]) @ pca_components.T
    d = jnp.sum((l2[:, None, :] - km_centers[None, :, :]) ** 2, axis=-1)
    labels_ref = jnp.argmin(d, axis=-1).astype(jnp.int32)

    assert labels.shape == (N,) and labels.dtype == jnp.int32
    assert bool(jnp.all(labels == labels_ref))
    print("KERNEL_OK")
</pallas_src>

<mosaic_0001>
module attributes {stable_mosaic.version = 11 : i64} {
  func.func @kernel(%arg0: i32, %arg1: memref<36x512xf32, #tpu.memory_space<vmem>>, %arg2: memref<8x36xf32, #tpu.memory_space<vmem>>, %arg3: memref<8x1xf32, #tpu.memory_space<vmem>>, %arg4: memref<2048x10xf32, #tpu.memory_space<vmem>>, %arg5: memref<1x10xf32, #tpu.memory_space<vmem>>, %arg6: memref<1x2xi32, #tpu.memory_space<vmem>>, %arg7: memref<8x512xf32, #tpu.memory_space<vmem>>, %arg8: memref<2x2048xf32, #tpu.memory_space<vmem>>) attributes {dimension_semantics = [#tpu.dimension_semantics<parallel>], iteration_bounds = array<i64: 1>, scalar_prefetch = 0 : i64, scratch_operands = 2 : i64, tpu.core_type = #tpu.core_type<tc>, window_params = [{transform_indices = @transform_0, window_bounds = array<i64: 36, 512>}, {pipeline_mode = #tpu.pipeline_mode<synchronous>, transform_indices = @transform_1, window_bounds = array<i64: 8, 36>}, {pipeline_mode = #tpu.pipeline_mode<synchronous>, transform_indices = @transform_2, window_bounds = array<i64: 8, 1>}, {pipeline_mode = #tpu.pipeline_mode<synchronous>, transform_indices = @transform_3, window_bounds = array<i64: 2048, 10>}, {pipeline_mode = #tpu.pipeline_mode<synchronous>, transform_indices = @transform_4, window_bounds = array<i64: 1, 10>}, {transform_indices = @transform_5, window_bounds = array<i64: 1, 2>}]} {
    %c0 = arith.constant 0 : index
    %c0_0 = arith.constant 0 : index
    %0 = vector.load %arg2[%c0, %c0_0] : memref<8x36xf32, #tpu.memory_space<vmem>>, vector<8x36xf32>
    %c0_1 = arith.constant 0 : index
    %c0_2 = arith.constant 0 : index
    %1 = vector.load %arg1[%c0_1, %c0_2] : memref<36x512xf32, #tpu.memory_space<vmem>>, vector<36x512xf32>
    %cst = arith.constant dense<0.000000e+00> : vector<8x512xf32>
    %2 = tpu.matmul %0, %1, %cst {dimension_numbers = #tpu.dot_dimension_numbers<[1], [0], [0], [1], [0, 0, 1, 1], [], []>} : vector<8x36xf32>, vector<36x512xf32>, vector<8x512xf32> -> vector<8x512xf32>
    %c0_3 = arith.constant 0 : index
    %c0_4 = arith.constant 0 : index
    %3 = vector.load %arg3[%c0_3, %c0_4] : memref<8x1xf32, #tpu.memory_space<vmem>>, vector<8x1xf32>
    %4 = vector.broadcast %3 : vector<8x1xf32> to vector<8x512xf32>
    %5 = arith.addf %2, %4 : vector<8x512xf32>
    %cst_5 = arith.constant 0.000000e+00 : f32
    %6 = vector.broadcast %cst_5 : f32 to vector<8x512xf32>
    %7 = arith.maximumf %5, %6 : vector<8x512xf32>
    %c0_6 = arith.constant 0 : index
    %c0_7 = arith.constant 0 : index
    %8 = vector.load %arg7[%c0_6, %c0_7] : memref<8x512xf32, #tpu.memory_space<vmem>>, vector<8x512xf32>
    tpu.vector_store %arg7[%c0_6, %c0_7], %7 {strides = array<i32>} : memref<8x512xf32, #tpu.memory_space<vmem>>, vector<8x512xf32>,
    %c0_8 = arith.constant 0 : index
    %c0_9 = arith.constant 0 : index
    %9 = vector.load %arg7[%c0_8, %c0_9] : memref<8x512xf32, #tpu.memory_space<vmem>>, vector<1x256xf32>
    %c0_10 = arith.constant 0 : index
    %c0_11 = arith.constant 0 : index
    %10 = vector.load %arg8[%c0_10, %c0_11] : memref<2x2048xf32, #tpu.memory_space<vmem>>, vector<1x256xf32>
    tpu.vector_store %arg8[%c0_10, %c0_11], %9 {strides = array<i32>} : memref<2x2048xf32, #tpu.memory_space<vmem>>, vector<1x256xf32>,
    %c1 = arith.constant 1 : index
    %c0_12 = arith.constant 0 : index
    %11 = vector.load %arg7[%c1, %c0_12] : memref<8x512xf32, #tpu.memory_space<vmem>>, vector<1x256xf32>
    %c0_13 = arith.constant 0 : index
    %c256 = arith.constant 256 : index
    %12 = vector.load %arg8[%c0_13, %c256] : memref<2x2048xf32, #tpu.memory_space<vmem>>, vector<1x256xf32>
    tpu.vector_store %arg8[%c0_13, %c256], %11 {strides = array<i32>} : memref<2x2048xf32, #tpu.memory_space<vmem>>, vector<1x256xf32>,
    %c2 = arith.constant 2 : index
    %c0_14 = arith.constant 0 : index
    %13 = vector.load %arg7[%c2, %c0_14] : memref<8x512xf32, #tpu.memory_space<vmem>>, vector<1x256xf32>
    %c0_15 = arith.constant 0 : index
    %c512 = arith.constant 512 : index
    %14 = vector.load %arg8[%c0_15, %c512] : memref<2x2048xf32, #tpu.memory_space<vmem>>, vector<1x256xf32>
    tpu.vector_store %arg8[%c0_15, %c512], %13 {strides = array<i32>} : memref<2x2048xf32, #tpu.memory_space<vmem>>, vector<1x256xf32>,
    %c3 = arith.constant 3 : index
    %c0_16 = arith.constant 0 : index
    %15 = vector.load %arg7[%c3, %c0_16] : memref<8x512xf32, #tpu.memory_space<vmem>>, vector<1x256xf32>
    %c0_17 = arith.constant 0 : index
    %c768 = arith.constant 768 : index
    %16 = vector.load %arg8[%c0_17, %c768] : memref<2x2048xf32, #tpu.memory_space<vmem>>, vector<1x256xf32>
    tpu.vector_store %arg8[%c0_17, %c768], %15 {strides = array<i32>} : memref<2x2048xf32, #tpu.memory_space<vmem>>, vector<1x256xf32>,
    %c4 = arith.constant 4 : index
    %c0_18 = arith.constant 0 : index
    %17 = vector.load %arg7[%c4, %c0_18] : memref<8x512xf32, #tpu.memory_space<vmem>>, vector<1x256xf32>
    %c0_19 = arith.constant 0 : index
    %c1024 = arith.constant 1024 : index
    %18 = vector.load %arg8[%c0_19, %c1024] : memref<2x2048xf32, #tpu.memory_space<vmem>>, vector<1x256xf32>
    tpu.vector_store %arg8[%c0_19, %c1024], %17 {strides = array<i32>} : memref<2x2048xf32, #tpu.memory_space<vmem>>, vector<1x256xf32>,
    %c5 = arith.constant 5 : index
    %c0_20 = arith.constant 0 : index
    %19 = vector.load %arg7[%c5, %c0_20] : memref<8x512xf32, #tpu.memory_space<vmem>>, vector<1x256xf32>
    %c0_21 = arith.constant 0 : index
    %c1280 = arith.constant 1280 : index
    %20 = vector.load %arg8[%c0_21, %c1280] : memref<2x2048xf32, #tpu.memory_space<vmem>>, vector<1x256xf32>
    tpu.vector_store %arg8[%c0_21, %c1280], %19 {strides = array<i32>} : memref<2x2048xf32, #tpu.memory_space<vmem>>, vector<1x256xf32>,
    %c6 = arith.constant 6 : index
    %c0_22 = arith.constant 0 : index
    %21 = vector.load %arg7[%c6, %c0_22] : memref<8x512xf32, #tpu.memory_space<vmem>>, vector<1x256xf32>
    %c0_23 = arith.constant 0 : index
    %c1536 = arith.constant 1536 : index
    %22 = vector.load %arg8[%c0_23, %c1536] : memref<2x2048xf32, #tpu.memory_space<vmem>>, vector<1x256xf32>
    tpu.vector_store %arg8[%c0_23, %c1536], %21 {strides = array<i32>} : memref<2x2048xf32, #tpu.memory_space<vmem>>, vector<1x256xf32>,
    %c7 = arith.constant 7 : index
    %c0_24 = arith.constant 0 : index
    %23 = vector.load %arg7[%c7, %c0_24] : memref<8x512xf32, #tpu.memory_space<vmem>>, vector<1x256xf32>
    %c0_25 = arith.constant 0 : index
    %c1792 = arith.constant 1792 : index
    %24 = vector.load %arg8[%c0_25, %c1792] : memref<2x2048xf32, #tpu.memory_space<vmem>>, vector<1x256xf32>
    tpu.vector_store %arg8[%c0_25, %c1792], %23 {strides = array<i32>} : memref<2x2048xf32, #tpu.memory_space<vmem>>, vector<1x256xf32>,
    %c0_26 = arith.constant 0 : index
    %c256_27 = arith.constant 256 : index
    %25 = vector.load %arg7[%c0_26, %c256_27] : memref<8x512xf32, #tpu.memory_space<vmem>>, vector<1x256xf32>
    %c1_28 = arith.constant 1 : index
    %c0_29 = arith.constant 0 : index
    %26 = vector.load %arg8[%c1_28, %c0_29] : memref<2x2048xf32, #tpu.memory_space<vmem>>, vector<1x256xf32>
    tpu.vector_store %arg8[%c1_28, %c0_29], %25 {strides = array<i32>} : memref<2x2048xf32, #tpu.memory_space<vmem>>, vector<1x256xf32>,
    %c1_30 = arith.constant 1 : index
    %c256_31 = arith.constant 256 : index
    %27 = vector.load %arg7[%c1_30, %c256_31] : memref<8x512xf32, #tpu.memory_space<vmem>>, vector<1x256xf32>
    %c1_32 = arith.constant 1 : index
    %c256_33 = arith.constant 256 : index
    %28 = vector.load %arg8[%c1_32, %c256_33] : memref<2x2048xf32, #tpu.memory_space<vmem>>, vector<1x256xf32>
    tpu.vector_store %arg8[%c1_32, %c256_33], %27 {strides = array<i32>} : memref<2x2048xf32, #tpu.memory_space<vmem>>, vector<1x256xf32>,
    %c2_34 = arith.constant 2 : index
    %c256_35 = arith.constant 256 : index
    %29 = vector.load %arg7[%c2_34, %c256_35] : memref<8x512xf32, #tpu.memory_space<vmem>>, vector<1x256xf32>
    %c1_36 = arith.constant 1 : index
    %c512_37 = arith.constant 512 : index
    %30 = vector.load %arg8[%c1_36, %c512_37] : memref<2x2048xf32, #tpu.memory_space<vmem>>, vector<1x256xf32>
    tpu.vector_store %arg8[%c1_36, %c512_37], %29 {strides = array<i32>} : memref<2x2048xf32, #tpu.memory_space<vmem>>, vector<1x256xf32>,
    %c3_38 = arith.constant 3 : index
    %c256_39 = arith.constant 256 : index
    %31 = vector.load %arg7[%c3_38, %c256_39] : memref<8x512xf32, #tpu.memory_space<vmem>>, vector<1x256xf32>
    %c1_40 = arith.constant 1 : index
    %c768_41 = arith.constant 768 : index
    %32 = vector.load %arg8[%c1_40, %c768_41] : memref<2x2048xf32, #tpu.memory_space<vmem>>, vector<1x256xf32>
    tpu.vector_store %arg8[%c1_40, %c768_41], %31 {strides = array<i32>} : memref<2x2048xf32, #tpu.memory_space<vmem>>, vector<1x256xf32>,
    %c4_42 = arith.constant 4 : index
    %c256_43 = arith.constant 256 : index
    %33 = vector.load %arg7[%c4_42, %c256_43] : memref<8x512xf32, #tpu.memory_space<vmem>>, vector<1x256xf32>
    %c1_44 = arith.constant 1 : index
    %c1024_45 = arith.constant 1024 : index
    %34 = vector.load %arg8[%c1_44, %c1024_45] : memref<2x2048xf32, #tpu.memory_space<vmem>>, vector<1x256xf32>
    tpu.vector_store %arg8[%c1_44, %c1024_45], %33 {strides = array<i32>} : memref<2x2048xf32, #tpu.memory_space<vmem>>, vector<1x256xf32>,
    %c5_46 = arith.constant 5 : index
    %c256_47 = arith.constant 256 : index
    %35 = vector.load %arg7[%c5_46, %c256_47] : memref<8x512xf32, #tpu.memory_space<vmem>>, vector<1x256xf32>
    %c1_48 = arith.constant 1 : index
    %c1280_49 = arith.constant 1280 : index
    %36 = vector.load %arg8[%c1_48, %c1280_49] : memref<2x2048xf32, #tpu.memory_space<vmem>>, vector<1x256xf32>
    tpu.vector_store %arg8[%c1_48, %c1280_49], %35 {strides = array<i32>} : memref<2x2048xf32, #tpu.memory_space<vmem>>, vector<1x256xf32>,
    %c6_50 = arith.constant 6 : index
    %c256_51 = arith.constant 256 : index
    %37 = vector.load %arg7[%c6_50, %c256_51] : memref<8x512xf32, #tpu.memory_space<vmem>>, vector<1x256xf32>
    %c1_52 = arith.constant 1 : index
    %c1536_53 = arith.constant 1536 : index
    %38 = vector.load %arg8[%c1_52, %c1536_53] : memref<2x2048xf32, #tpu.memory_space<vmem>>, vector<1x256xf32>
    tpu.vector_store %arg8[%c1_52, %c1536_53], %37 {strides = array<i32>} : memref<2x2048xf32, #tpu.memory_space<vmem>>, vector<1x256xf32>,
    %c7_54 = arith.constant 7 : index
    %c256_55 = arith.constant 256 : index
    %39 = vector.load %arg7[%c7_54, %c256_55] : memref<8x512xf32, #tpu.memory_space<vmem>>, vector<1x256xf32>
    %c1_56 = arith.constant 1 : index
    %c1792_57 = arith.constant 1792 : index
    %40 = vector.load %arg8[%c1_56, %c1792_57] : memref<2x2048xf32, #tpu.memory_space<vmem>>, vector<1x256xf32>
    tpu.vector_store %arg8[%c1_56, %c1792_57], %39 {strides = array<i32>} : memref<2x2048xf32, #tpu.memory_space<vmem>>, vector<1x256xf32>,
    %c0_58 = arith.constant 0 : index
    %c0_59 = arith.constant 0 : index
    %41 = vector.load %arg5[%c0_58, %c0_59] : memref<1x10xf32, #tpu.memory_space<vmem>>, vector<1x10xf32>
    %c0_60 = arith.constant 0 : index
    %c0_61 = arith.constant 0 : index
    %42 = vector.load %arg8[%c0_60, %c0_61] : memref<2x2048xf32, #tpu.memory_space<vmem>>, vector<2x2048xf32>
    %c0_62 = arith.constant 0 : index
    %c0_63 = arith.constant 0 : index
    %43 = vector.load %arg4[%c0_62, %c0_63] : memref<2048x10xf32, #tpu.memory_space<vmem>>, vector<2048x10xf32>
    %cst_64 = arith.constant dense<0.000000e+00> : vector<2x10xf32>
    %44 = tpu.matmul %42, %43, %cst_64 {dimension_numbers = #tpu.dot_dimension_numbers<[1], [0], [0], [1], [0, 0, 1, 1], [], []>} : vector<2x2048xf32>, vector<2048x10xf32>, vector<2x10xf32> -> vector<2x10xf32>
    %cst_65 = arith.constant 2.000000e+00 : f32
    %45 = vector.broadcast %cst_65 : f32 to vector<2x10xf32>
    %46 = arith.mulf %45, %44 : vector<2x10xf32>
    %47 = vector.broadcast %41 : vector<1x10xf32> to vector<2x10xf32>
    %48 = arith.subf %47, %46 : vector<2x10xf32>
    %49 = tpu.iota {dimensions = array<i32: 1>} : vector<2x10xi32>
    %cst_66 = arith.constant dense<0x7F800000> : vector<2xf32>
    %50 = vector.multi_reduction <minimumf>, %48, %cst_66 [1] : vector<2x10xf32> to vector<2xf32>
    %51 = vector.shape_cast %50 : vector<2xf32> to vector<2x1xf32>
    %52 = vector.broadcast %51 : vector<2x1xf32> to vector<2x10xf32>
    %53 = arith.cmpf oeq, %48, %52 : vector<2x10xf32>
    %c10_i32 = arith.constant 10 : i32
    %54 = vector.broadcast %c10_i32 : i32 to vector<2x10xi32>
    %55 = arith.select %53, %49, %54 : vector<2x10xi1>, vector<2x10xi32>
    %cst_67 = arith.constant dense<2147483647> : vector<2xi32>
    %56 = vector.multi_reduction <minsi>, %55, %cst_67 [1] : vector<2x10xi32> to vector<2xi32>
    %57 = vector.shape_cast %56 : vector<2xi32> to vector<2x1xi32>
    %58 = tpu.transpose %57, [1, 0] : vector<2x1xi32> -> vector<1x2xi32>
    %c0_68 = arith.constant 0 : index
    %c0_69 = arith.constant 0 : index
    %59 = vector.load %arg6[%c0_68, %c0_69] : memref<1x2xi32, #tpu.memory_space<vmem>>, vector<1x2xi32>
    tpu.vector_store %arg6[%c0_68, %c0_69], %58 {strides = array<i32>} : memref<1x2xi32, #tpu.memory_space<vmem>>, vector<1x2xi32>,
    return
  }
  func.func @transform_0(%arg0: i32) -> (i32, i32) {
    %c0_i32 = arith.constant 0 : i32
    %c0_i32_0 = arith.constant 0 : i32
    return %c0_i32, %arg0 : i32, i32
  }
  func.func @transform_1(%arg0: i32) -> (i32, i32) {
    %c0_i32 = arith.constant 0 : i32
    %c0_i32_0 = arith.constant 0 : i32
    %c0_i32_1 = arith.constant 0 : i32
    return %c0_i32, %c0_i32_0 : i32, i32
  }
  func.func @transform_2(%arg0: i32) -> (i32, i32) {
    %c0_i32 = arith.constant 0 : i32
    %c0_i32_0 = arith.constant 0 : i32
    %c0_i32_1 = arith.constant 0 : i32
    return %c0_i32, %c0_i32_0 : i32, i32
  }
  func.func @transform_3(%arg0: i32) -> (i32, i32) {
    %c0_i32 = arith.constant 0 : i32
    %c0_i32_0 = arith.constant 0 : i32
    %c0_i32_1 = arith.constant 0 : i32
    return %c0_i32, %c0_i32_0 : i32, i32
  }
  func.func @transform_4(%arg0: i32) -> (i32, i32) {
    %c0_i32 = arith.constant 0 : i32
    %c0_i32_0 = arith.constant 0 : i32
    %c0_i32_1 = arith.constant 0 : i32
    return %c0_i32, %c0_i32_0 : i32, i32
  }
  func.func @transform_5(%arg0: i32) -> (i32, i32) {
    %c0_i32 = arith.constant 0 : i32
    %c0_i32_0 = arith.constant 0 : i32
    return %c0_i32, %arg0 : i32, i32
  }
}

</mosaic_0001>

<llo_original>
// kernel: clustering_model_forward.1
$region0: #{clustering_model_forward.1}
  #allocation0 [shape = 'u32[]', space=smem, size = 0x4, offset = 0x4, fixed_abs, tag = 'smem constant byte address 0x4 - core index']
  #allocation1 [shape = 'u32[144,128]{1,0:T(1,128)}', space=vmem, size = 0x12000, scoped, tag = 'internal scratch']
  #allocation2 [shape = 'f32[8,512]{1,0:T(8,128)}', space=vmem, size = 0x4000, scoped, tag = 'scratch operand']
  #allocation3 [shape = 'f32[2,2048]{1,0:T(2,128)}', space=vmem, size = 0x4000, scoped, tag = 'scratch operand']
  %s0 = inlined_call_operand.vmem [shape: f32[36,512], index: 0, kind: input, shape index: {}]
  %s1 = inlined_call_operand.vmem [shape: f32[8,36], index: 1, kind: input, shape index: {}]
  %s2 = inlined_call_operand.vmem [shape: f32[8,1], index: 2, kind: input, shape index: {}]
  %s3 = inlined_call_operand.vmem [shape: f32[2048,10], index: 3, kind: input, shape index: {}]
  %s4 = inlined_call_operand.vmem [shape: f32[1,10], index: 4, kind: input, shape index: {}]
  %s5 = inlined_call_operand.hbm [shape: s32[1,2], index: 5, kind: output, shape index: {}]
  %s6 = sld [smem:[#allocation0]]
  $region30: #{clustering_model_forward.1} parent=0
    _
  %s8 = ssub.s32 1, %s6
  %s9 = scalar_select 0, %s8, %s6
  $region1: #{clustering_model_forward.1} parent=0
    #allocation4 [shape = 'u8[512]{0}', space=vmem, size = 0x400, scoped, tag = 'output window, operand 0, single buffered']
    #allocation5 [shape = 's32[1]{0}', space=sflag, size = 0x4, scoped, tag = 'scoped memory for clustering_model_forward.1']
    %10 = vsyncpa [#allocation5], 0
    // Predicated region
    $region2: #{clustering_model_forward.1} parent=1 // pred_check
      _
    $region3: #{clustering_model_forward.1} parent=1 // pred_check_branch
      %12 = sbr.rel (0) target = $region5
    $region4: #{clustering_model_forward.1} parent=1 // pred_region
      _
    $region5: #{clustering_model_forward.1} parent=1 // pred_fallthru
      _
    // Predicated region
    $region6: #{clustering_model_forward.1} parent=1 // pred_check
      _
    $region7: #{clustering_model_forward.1} parent=1 // pred_check_branch
      %14 = sbr.rel (0) target = $region9
    $region8: #{clustering_model_forward.1} parent=1 // pred_region
      _
    $region9: #{clustering_model_forward.1} parent=1 // pred_fallthru
      _
    // Predicated region
    $region10: #{clustering_model_forward.1} parent=1 // pred_check
      _
    $region11: #{clustering_model_forward.1} parent=1 // pred_check_branch
      %16 = sbr.rel (0) target = $region13
    $region12: #{clustering_model_forward.1} parent=1 // pred_region
      _
    $region13: #{clustering_model_forward.1} parent=1 // pred_fallthru
      _
    // Predicated region
    $region14: #{clustering_model_forward.1} parent=1 // pred_check
      _
    $region15: #{clustering_model_forward.1} parent=1 // pred_check_branch
      %18 = sbr.rel (0) target = $region17
    $region16: #{clustering_model_forward.1} parent=1 // pred_region
      _
    $region17: #{clustering_model_forward.1} parent=1 // pred_fallthru
      _
    // Predicated region
    $region18: #{clustering_model_forward.1} parent=1 // pred_check
      _
    $region19: #{clustering_model_forward.1} parent=1 // pred_check_branch
      %20 = sbr.rel (0) target = $region21
    $region20: #{clustering_model_forward.1} parent=1 // pred_region
      _
    $region21: #{clustering_model_forward.1} parent=1 // pred_fallthru
      _
    %v21 = vld [vmem:[%s1] sm:$0xff]
    %v22 = vld [vmem:[%s0] sm:$0xff]
    %v23 = vld [vmem:[%s0 + $0x8] sm:$0xff]
    %v24 = vld [vmem:[%s0 + $0x10] sm:$0xff]
    %v25 = vld [vmem:[%s0 + $0x18] sm:$0xff]
    %v26 = vld [vmem:[%s0 + $0x20] sm:$0xff]
    %v27 = vld [vmem:[%s0 + $0x28] sm:$0xff]
    %v28 = vld [vmem:[%s0 + $0x30] sm:$0xff]
    %v29 = vld [vmem:[%s0 + $0x38] sm:$0xff]
    %v30 = vld [vmem:[%s0 + $0x40] sm:$0xff]
    %v31 = vld [vmem:[%s0 + $0x48] sm:$0xff]
    %v32 = vld [vmem:[%s0 + $0x50] sm:$0xff]
    %v33 = vld [vmem:[%s0 + $0x58] sm:$0xff]
    %v34 = vld [vmem:[%s0 + $0x60] sm:$0xff]
    %v35 = vld [vmem:[%s0 + $0x68] sm:$0xff]
    %v36 = vld [vmem:[%s0 + $0x70] sm:$0xff]
    %v37 = vld [vmem:[%s0 + $0x78] sm:$0xff]
    %v38 = vld [vmem:[%s0 + $0x80] sm:$0xf]
    %v39 = vld [vmem:[%s0 + $0x88] sm:$0xf]
    %v40 = vld [vmem:[%s0 + $0x90] sm:$0xf]
    %v41 = vld [vmem:[%s0 + $0x98] sm:$0xf]
    %v42 = vld [vmem:[%s2] sm:$0xff]
    %44 = vset.pattern.permute.xlu0 0
    %45 = vperm.xlu0 %44, %v42
    %v46 = vpop.permute.xlu0 %45
    %vm48 = vcmask 293888
    %v50 = vsel %vm48, %v21, 0
    %vm52 = vcmask 1043456
    %v54 = vsel %vm52, %v38, 0
    %v57 = vsel %vm52, %v39, 0
    %v60 = vsel %vm52, %v40, 0
    %v63 = vsel %vm52, %v41, 0
    %65 = vmatprep.subr.mxu0 %v23
    %66 = vmatpush1.msra.mxu0 %v22
    %67 = vmatprep.subr.mxu0 %v27
    %68 = vmatpush1.msra.mxu0 %v26
    %69 = vmatprep.subr.mxu0 %v31
    %70 = vmatpush1.msra.mxu0 %v30
    %71 = vmatprep.subr.mxu0 %v35
    %72 = vmatpush1.msra.mxu0 %v34
    %73 = vmatprep.subr.mxu0 %v57
    %74 = vmatpush1.msra.mxu0 %v54
    %75 = vmatprep.subr.mxu0 0.0
    %76 = vmatpush1.msra.mxu0 0.0
    %77 = vmatprep.subr.mxu0 0.0
    %78 = vmatpush1.msra.mxu0 0.0
    %79 = vmatprep.subr.mxu0 0.0
    %80 = vmatpush1.msra.mxu0 0.0
    %81 = vmatprep.subr.mxu0 0.0
    %82 = vmatpush1.msra.mxu0 0.0
    %83 = vmatprep.subr.mxu0 0.0
    %84 = vmatpush1.msra.mxu0 0.0
    %85 = vmatprep.subr.mxu0 0.0
    %86 = vmatpush1.msra.mxu0 0.0
    %87 = vmatprep.subr.mxu0 0.0
    %88 = vmatpush1.msra.mxu0 0.0
    %89 = vmatprep.subr.mxu0 0.0
    %90 = vmatpush1.msra.mxu0 0.0
    %91 = vmatprep.subr.mxu0 0.0
    %92 = vmatpush1.msra.mxu0 0.0
    %93 = vmatprep.subr.mxu0 0.0
    %94 = vmatpush1.msra.mxu0 0.0
    %95 = vmatprep.subr.mxu0 0.0
    %96 = vmatpush1.msra.mxu0 0.0
    %97 = vmatprep.subr.mxu0 0.0
    %98 = vmatpush1.msra.mxu0 0.0
    %99 = vmatprep.subr.mxu0 0.0
    %100 = vmatpush1.msra.mxu0 0.0
    %101 = vmatprep.subr.mxu0 0.0
    %102 = vmatpush1.msra.mxu0 0.0
    %103 = vmatprep.subr.mxu0 0.0
    %104 = vmatpush1.msra.mxu0 0.0
    %105 = vmatprep.subr.mxu0 0.0
    %106 = vmatpush1.msra.mxu0 0.0
    %107 = vmatprep.subr.mxu0 0.0
    %108 = vmatpush1.msra.mxu0 0.0
    %109 = vmatprep.subr.mxu0 0.0
    %110 = vmatpush1.msra.mxu0 0.0
    %111 = vmatprep.subr.mxu0 0.0
    %112 = vmatpush1.msra.mxu0 0.0
    %113 = vmatprep.subr.mxu0 0.0
    %114 = vmatpush1.msra.mxu0 0.0
    %115 = vmatprep.subr.mxu0 0.0
    %116 = vmatpush1.msra.mxu0 0.0
    %117 = vmatprep.subr.mxu0 0.0
    %118 = vmatpush1.msra.mxu0 0.0
    %119 = vmatprep.subr.mxu0 0.0
    %120 = vmatpush1.msra.mxu0 0.0
    %121 = vmatprep.subr.mxu0 0.0
    %122 = vmatpush1.msra.mxu0 0.0
    %123 = vmatprep.subr.mxu0 0.0
    %124 = vmatpush1.msra.mxu0 0.0
    %125 = vmatprep.subr.mxu0 0.0
    %126 = vmatpush1.msra.mxu0 0.0
    %127 = vmatprep.subr.mxu0 0.0
    %128 = vmatpush1.msra.mxu0 0.0
    %129 = vmatprep.mubr.f32.mxu0 0.0
    %130 = vmatmul.mubr.f32.gmra.mrb[0].mxu0 %v50
    %v131 = vpop.f32.mrb[0].mxu0
    %v132 = vadd.f32 %v46, %v131
    %v133 = vpop.f32.mrb[0].mxu0
    %v134 = vadd.f32 %v46, %v133
    %135 = vdwg.mxu0
    %136 = vmatprep.subr.mxu0 %v25
    %137 = vmatpush1.msra.mxu0 %v24
    %138 = vmatprep.subr.mxu0 %v29
    %139 = vmatpush1.msra.mxu0 %v28
    %140 = vmatprep.subr.mxu0 %v33
    %141 = vmatpush1.msra.mxu0 %v32
    %142 = vmatprep.subr.mxu0 %v37
    %143 = vmatpush1.msra.mxu0 %v36
    %144 = vmatprep.subr.mxu0 %v63
    %145 = vmatpush1.msra.mxu0 %v60
    %146 = vmatprep.subr.mxu0 0.0
    %147 = vmatpush1.msra.mxu0 0.0
    %148 = vmatprep.subr.mxu0 0.0
    %149 = vmatpush1.msra.mxu0 0.0
    %150 = vmatprep.subr.mxu0 0.0
    %151 = vmatpush1.msra.mxu0 0.0
    %152 = vmatprep.subr.mxu0 0.0
    %153 = vmatpush1.msra.mxu0 0.0
    %154 = vmatprep.subr.mxu0 0.0
    %155 = vmatpush1.msra.mxu0 0.0
    %156 = vmatprep.subr.mxu0 0.0
    %157 = vmatpush1.msra.mxu0 0.0
    %158 = vmatprep.subr.mxu0 0.0
    %159 = vmatpush1.msra.mxu0 0.0
    %160 = vmatprep.subr.mxu0 0.0
    %161 = vmatpush1.msra.mxu0 0.0
    %162 = vmatprep.subr.mxu0 0.0
    %163 = vmatpush1.msra.mxu0 0.0
    %164 = vmatprep.subr.mxu0 0.0
    %165 = vmatpush1.msra.mxu0 0.0
    %166 = vmatprep.subr.mxu0 0.0
    %167 = vmatpush1.msra.mxu0 0.0
    %168 = vmatprep.subr.mxu0 0.0
    %169 = vmatpush1.msra.mxu0 0.0
    %170 = vmatprep.subr.mxu0 0.0
    %171 = vmatpush1.msra.mxu0 0.0
    %172 = vmatprep.subr.mxu0 0.0
    %173 = vmatpush1.msra.mxu0 0.0
    %174 = vmatprep.subr.mxu0 0.0
    %175 = vmatpush1.msra.mxu0 0.0
    %176 = vmatprep.subr.mxu0 0.0
    %177 = vmatpush1.msra.mxu0 0.0
    %178 = vmatprep.subr.mxu0 0.0
    %179 = vmatpush1.msra.mxu0 0.0
    %180 = vmatprep.subr.mxu0 0.0
    %181 = vmatpush1.msra.mxu0 0.0
    %182 = vmatprep.subr.mxu0 0.0
    %183 = vmatpush1.msra.mxu0 0.0
    %184 = vmatprep.subr.mxu0 0.0
    %185 = vmatpush1.msra.mxu0 0.0
    %186 = vmatprep.subr.mxu0 0.0
    %187 = vmatpush1.msra.mxu0 0.0
    %188 = vmatprep.subr.mxu0 0.0
    %189 = vmatpush1.msra.mxu0 0.0
    %190 = vmatprep.subr.mxu0 0.0
    %191 = vmatpush1.msra.mxu0 0.0
    %192 = vmatprep.subr.mxu0 0.0
    %193 = vmatpush1.msra.mxu0 0.0
    %194 = vmatprep.subr.mxu0 0.0
    %195 = vmatpush1.msra.mxu0 0.0
    %196 = vmatprep.subr.mxu0 0.0
    %197 = vmatpush1.msra.mxu0 0.0
    %198 = vmatprep.subr.mxu0 0.0
    %199 = vmatpush1.msra.mxu0 0.0
    %200 = vmatprep.mubr.f32.mxu0 0.0
    %201 = vmatmul.mubr.f32.gmra.mrb[0].mxu0 %v50
    %v202 = vpop.f32.mrb[0].mxu0
    %v203 = vadd.f32 %v46, %v202
    %v204 = vpop.f32.mrb[0].mxu0
    %v205 = vadd.f32 %v46, %v204
    %206 = vdwg.mxu0
    %v207 = vmax.f32 %v132, 0.0
    %v208 = vmax.f32 %v134, 0.0
    %v209 = vmax.f32 %v203, 0.0
    %v210 = vmax.f32 %v205, 0.0
    %211 = vst [vmem:[#allocation2] sm:$0xff] %v207
    %212 = vst [vmem:[#allocation2 + $0x8] sm:$0xff] %v208
    %213 = vst [vmem:[#allocation2 + $0x10] sm:$0xff] %v209
    %214 = vst [vmem:[#allocation2 + $0x18] sm:$0xff] %v210
    %v215 = vld [vmem:[#allocation2] ss:$8 sm:$0x3]
    %v216 = vlaneseq
    %vm217 = vcmp.ge.s32.totalorder %v216, 0
    %vm218 = vcmp.lt.s32.totalorder %v216, 256
    %vm219 = vmand %vm217, %vm218
    %220 = vst.msk [vmem:[#allocation3] ss:$2 sm:$0x3] %vm219, %v215
    %s221 = scalar_lea.vmem [#allocation2], 1
    %v222 = vld [vmem:[%s221] ss:$8 sm:$0x3]
    %s223 = scalar_lea.vmem [#allocation3], 4
    %224 = vst.msk [vmem:[%s223] ss:$2 sm:$0x3] %vm219, %v222
    %s225 = scalar_lea.vmem [#allocation2], 2
    %v226 = vld [vmem:[%s225] ss:$8 sm:$0x3]
    %s227 = scalar_lea.vmem [#allocation3], 8
    %228 = vst.msk [vmem:[%s227] ss:$2 sm:$0x3] %vm219, %v226
    %s229 = scalar_lea.vmem [#allocation2], 3
    %v230 = vld [vmem:[%s229] ss:$8 sm:$0x3]
    %s231 = scalar_lea.vmem [#allocation3], 12
    %232 = vst.msk [vmem:[%s231] ss:$2 sm:$0x3] %vm219, %v230
    %s233 = scalar_lea.vmem [#allocation2], 4
    %v234 = vld [vmem:[%s233] ss:$8 sm:$0x3]
    %s235 = scalar_lea.vmem [#allocation3], 16
    %236 = vst.msk [vmem:[%s235] ss:$2 sm:$0x3] %vm219, %v234
    %s237 = scalar_lea.vmem [#allocation2], 5
    %v238 = vld [vmem:[%s237] ss:$8 sm:$0x3]
    %s239 = scalar_lea.vmem [#allocation3], 20
    %240 = vst.msk [vmem:[%s239] ss:$2 sm:$0x3] %vm219, %v238
    %s241 = scalar_lea.vmem [#allocation2], 6
    %v242 = vld [vmem:[%s241] ss:$8 sm:$0x3]
    %s243 = scalar_lea.vmem [#allocation3], 24
    %244 = vst.msk [vmem:[%s243] ss:$2 sm:$0x3] %vm219, %v242
    %s245 = scalar_lea.vmem [#allocation2], 7
    %v246 = vld [vmem:[%s245] ss:$8 sm:$0x3]
    %s247 = scalar_lea.vmem [#allocation3], 28
    %248 = vst.msk [vmem:[%s247] ss:$2 sm:$0x3] %vm219, %v246
    %s249 = scalar_lea.vmem [#allocation2], 16
    %v250 = vld [vmem:[%s249] ss:$8 sm:$0x3]
    %s251 = scalar_lea.vmem [#allocation3], 1
    %252 = vst.msk [vmem:[%s251] ss:$2 sm:$0x3] %vm219, %v250
    %s253 = scalar_lea.vmem [#allocation2], 17
    %v254 = vld [vmem:[%s253] ss:$8 sm:$0x3]
    %s255 = scalar_lea.vmem [#allocation3], 5
    %256 = vst.msk [vmem:[%s255] ss:$2 sm:$0x3] %vm219, %v254
    %s257 = scalar_lea.vmem [#allocation2], 18
    %v258 = vld [vmem:[%s257] ss:$8 sm:$0x3]
    %s259 = scalar_lea.vmem [#allocation3], 9
    %260 = vst.msk [vmem:[%s259] ss:$2 sm:$0x3] %vm219, %v258
    %s261 = scalar_lea.vmem [#allocation2], 19
    %v262 = vld [vmem:[%s261] ss:$8 sm:$0x3]
    %s263 = scalar_lea.vmem [#allocation3], 13
    %264 = vst.msk [vmem:[%s263] ss:$2 sm:$0x3] %vm219, %v262
    %s265 = scalar_lea.vmem [#allocation2], 20
    %v266 = vld [vmem:[%s265] ss:$8 sm:$0x3]
    %s267 = scalar_lea.vmem [#allocation3], 17
    %268 = vst.msk [vmem:[%s267] ss:$2 sm:$0x3] %vm219, %v266
    %s269 = scalar_lea.vmem [#allocation2], 21
    %v270 = vld [vmem:[%s269] ss:$8 sm:$0x3]
    %s271 = scalar_lea.vmem [#allocation3], 21
    %272 = vst.msk [vmem:[%s271] ss:$2 sm:$0x3] %vm219, %v270
    %s273 = scalar_lea.vmem [#allocation2], 22
    %v274 = vld [vmem:[%s273] ss:$8 sm:$0x3]
    %s275 = scalar_lea.vmem [#allocation3], 25
    %276 = vst.msk [vmem:[%s275] ss:$2 sm:$0x3] %vm219, %v274
    %s277 = scalar_lea.vmem [#allocation2], 23
    %v278 = vld [vmem:[%s277] ss:$8 sm:$0x3]
    %s279 = scalar_lea.vmem [#allocation3], 29
    %280 = vst.msk [vmem:[%s279] ss:$2 sm:$0x3] %vm219, %v278
    %v281 = vld [vmem:[%s4] sm:$0x1]
    %v282 = vld [vmem:[#allocation3] sm:$0xff]
    %v283 = vld [vmem:[#allocation3 + $0x8] sm:$0xff]
    %v284 = vld [vmem:[#allocation3 + $0x10] sm:$0xff]
    %v285 = vld [vmem:[#allocation3 + $0x18] sm:$0xff]
    %v286 = vld [vmem:[%s3] sm:$0xff]
    %v287 = vld [vmem:[%s3 + $0x8] sm:$0xff]
    %v288 = vld [vmem:[%s3 + $0x10] sm:$0xff]
    %v289 = vld [vmem:[%s3 + $0x18] sm:$0xff]
    %v290 = vld [vmem:[%s3 + $0x20] sm:$0xff]
    %v291 = vld [vmem:[%s3 + $0x28] sm:$0xff]
    %v292 = vld [vmem:[%s3 + $0x30] sm:$0xff]
    %v293 = vld [vmem:[%s3 + $0x38] sm:$0xff]
    %v294 = vld [vmem:[%s3 + $0x40] sm:$0xff]
    %v295 = vld [vmem:[%s3 + $0x48] sm:$0xff]
    %v296 = vld [vmem:[%s3 + $0x50] sm:$0xff]
    %v297 = vld [vmem:[%s3 + $0x58] sm:$0xff]
    %v298 = vld [vmem:[%s3 + $0x60] sm:$0xff]
    %v299 = vld [vmem:[%s3 + $0x68] sm:$0xff]
    %v300 = vld [vmem:[%s3 + $0x70] sm:$0xff]
    %v301 = vld [vmem:[%s3 + $0x78] sm:$0xff]
    %v302 = vld [vmem:[%s3 + $0x80] sm:$0xff]
    %v303 = vld [vmem:[%s3 + $0x88] sm:$0xff]
    %v304 = vld [vmem:[%s3 + $0x90] sm:$0xff]
    %v305 = vld [vmem:[%s3 + $0x98] sm:$0xff]
    %v306 = vld [vmem:[%s3 + $0xa0] sm:$0xff]
    %v307 = vld [vmem:[%s3 + $0xa8] sm:$0xff]
    %v308 = vld [vmem:[%s3 + $0xb0] sm:$0xff]
    %v309 = vld [vmem:[%s3 + $0xb8] sm:$0xff]
    %v310 = vld [vmem:[%s3 + $0xc0] sm:$0xff]
    %v311 = vld [vmem:[%s3 + $0xc8] sm:$0xff]
    %v312 = vld [vmem:[%s3 + $0xd0] sm:$0xff]
    %v313 = vld [vmem:[%s3 + $0xd8] sm:$0xff]
    %v314 = vld [vmem:[%s3 + $0xe0] sm:$0xff]
    %v315 = vld [vmem:[%s3 + $0xe8] sm:$0xff]
    %v316 = vld [vmem:[%s3 + $0xf0] sm:$0xff]
    %v317 = vld [vmem:[%s3 + $0xf8] sm:$0xff]
    %v318 = vld [vmem:[%s3 + $0x100] sm:$0xff]
    %v319 = vld [vmem:[%s3 + $0x108] sm:$0xff]
    %v320 = vld [vmem:[%s3 + $0x110] sm:$0xff]
    %v321 = vld [vmem:[%s3 + $0x118] sm:$0xff]
    %v322 = vld [vmem:[%s3 + $0x120] sm:$0xff]
    %v323 = vld [vmem:[%s3 + $0x128] sm:$0xff]
    %v324 = vld [vmem:[%s3 + $0x130] sm:$0xff]
    %v325 = vld [vmem:[%s3 + $0x138] sm:$0xff]
    %v326 = vld [vmem:[%s3 + $0x140] sm:$0xff]
    %v327 = vld [vmem:[%s3 + $0x148] sm:$0xff]
    %v328 = vld [vmem:[%s3 + $0x150] sm:$0xff]
    %v329 = vld [vmem:[%s3 + $0x158] sm:$0xff]
    %v330 = vld [vmem:[%s3 + $0x160] sm:$0xff]
    %v331 = vld [vmem:[%s3 + $0x168] sm:$0xff]
    %v332 = vld [vmem:[%s3 + $0x170] sm:$0xff]
    %v333 = vld [vmem:[%s3 + $0x178] sm:$0xff]
    %v334 = vld [vmem:[%s3 + $0x180] sm:$0xff]
    %v335 = vld [vmem:[%s3 + $0x188] sm:$0xff]
    %v336 = vld [vmem:[%s3 + $0x190] sm:$0xff]
    %v337 = vld [vmem:[%s3 + $0x198] sm:$0xff]
    %v338 = vld [vmem:[%s3 + $0x1a0] sm:$0xff]
    %v339 = vld [vmem:[%s3 + $0x1a8] sm:$0xff]
    %v340 = vld [vmem:[%s3 + $0x1b0] sm:$0xff]
    %v341 = vld [vmem:[%s3 + $0x1b8] sm:$0xff]
    %v342 = vld [vmem:[%s3 + $0x1c0] sm:$0xff]
    %v343 = vld [vmem:[%s3 + $0x1c8] sm:$0xff]
    %v344 = vld [vmem:[%s3 + $0x1d0] sm:$0xff]
    %v345 = vld [vmem:[%s3 + $0x1d8] sm:$0xff]
    %v346 = vld [vmem:[%s3 + $0x1e0] sm:$0xff]
    %v347 = vld [vmem:[%s3 + $0x1e8] sm:$0xff]
    %v348 = vld [vmem:[%s3 + $0x1f0] sm:$0xff]
    %v349 = vld [vmem:[%s3 + $0x1f8] sm:$0xff]
    %v350 = vld [vmem:[%s3 + $0x200] sm:$0xff]
    %v351 = vld [vmem:[%s3 + $0x208] sm:$0xff]
    %v352 = vld [vmem:[%s3 + $0x210] sm:$0xff]
    %v353 = vld [vmem:[%s3 + $0x218] sm:$0xff]
    %v354 = vld [vmem:[%s3 + $0x220] sm:$0xff]
    %v355 = vld [vmem:[%s3 + $0x228] sm:$0xff]
    %v356 = vld [vmem:[%s3 + $0x230] sm:$0xff]
    %v357 = vld [vmem:[%s3 + $0x238] sm:$0xff]
    %v358 = vld [vmem:[%s3 + $0x240] sm:$0xff]
    %v359 = vld [vmem:[%s3 + $0x248] sm:$0xff]
    %v360 = vld [vmem:[%s3 + $0x250] sm:$0xff]
    %v361 = vld [vmem:[%s3 + $0x258] sm:$0xff]
    %v362 = vld [vmem:[%s3 + $0x260] sm:$0xff]
    %v363 = vld [vmem:[%s3 + $0x268] sm:$0xff]
    %v364 = vld [vmem:[%s3 + $0x270] sm:$0xff]
    %v365 = vld [vmem:[%s3 + $0x278] sm:$0xff]
    %v366 = vld [vmem:[%s3 + $0x280] sm:$0xff]
    %v367 = vld [vmem:[%s3 + $0x288] sm:$0xff]
    %v368 = vld [vmem:[%s3 + $0x290] sm:$0xff]
    %v369 = vld [vmem:[%s3 + $0x298] sm:$0xff]
    %v370 = vld [vmem:[%s3 + $0x2a0] sm:$0xff]
    %v371 = vld [vmem:[%s3 + $0x2a8] sm:$0xff]
    %v372 = vld [vmem:[%s3 + $0x2b0] sm:$0xff]
    %v373 = vld [vmem:[%s3 + $0x2b8] sm:$0xff]
    %v374 = vld [vmem:[%s3 + $0x2c0] sm:$0xff]
    %v375 = vld [vmem:[%s3 + $0x2c8] sm:$0xff]
    %v376 = vld [vmem:[%s3 + $0x2d0] sm:$0xff]
    %v377 = vld [vmem:[%s3 + $0x2d8] sm:$0xff]
    %v378 = vld [vmem:[%s3 + $0x2e0] sm:$0xff]
    %v379 = vld [vmem:[%s3 + $0x2e8] sm:$0xff]
    %v380 = vld [vmem:[%s3 + $0x2f0] sm:$0xff]
    %v381 = vld [vmem:[%s3 + $0x2f8] sm:$0xff]
    %v382 = vld [vmem:[%s3 + $0x300] sm:$0xff]
    %v383 = vld [vmem:[%s3 + $0x308] sm:$0xff]
    %v384 = vld [vmem:[%s3 + $0x310] sm:$0xff]
    %v385 = vld [vmem:[%s3 + $0x318] sm:$0xff]
    %v386 = vld [vmem:[%s3 + $0x320] sm:$0xff]
    %v387 = vld [vmem:[%s3 + $0x328] sm:$0xff]
    %v388 = vld [vmem:[%s3 + $0x330] sm:$0xff]
    %v389 = vld [vmem:[%s3 + $0x338] sm:$0xff]
    %v390 = vld [vmem:[%s3 + $0x340] sm:$0xff]
    %v391 = vld [vmem:[%s3 + $0x348] sm:$0xff]
    %v392 = vld [vmem:[%s3 + $0x350] sm:$0xff]
    %v393 = vld [vmem:[%s3 + $0x358] sm:$0xff]
    %v394 = vld [vmem:[%s3 + $0x360] sm:$0xff]
    %v395 = vld [vmem:[%s3 + $0x368] sm:$0xff]
    %v396 = vld [vmem:[%s3 + $0x370] sm:$0xff]
    %v397 = vld [vmem:[%s3 + $0x378] sm:$0xff]
    %v398 = vld [vmem:[%s3 + $0x380] sm:$0xff]
    %v399 = vld [vmem:[%s3 + $0x388] sm:$0xff]
    %v400 = vld [vmem:[%s3 + $0x390] sm:$0xff]
    %v401 = vld [vmem:[%s3 + $0x398] sm:$0xff]
    %v402 = vld [vmem:[%s3 + $0x3a0] sm:$0xff]
    %v403 = vld [vmem:[%s3 + $0x3a8] sm:$0xff]
    %v404 = vld [vmem:[%s3 + $0x3b0] sm:$0xff]
    %v405 = vld [vmem:[%s3 + $0x3b8] sm:$0xff]
    %v406 = vld [vmem:[%s3 + $0x3c0] sm:$0xff]
    %v407 = vld [vmem:[%s3 + $0x3c8] sm:$0xff]
    %v408 = vld [vmem:[%s3 + $0x3d0] sm:$0xff]
    %v409 = vld [vmem:[%s3 + $0x3d8] sm:$0xff]
    %v410 = vld [vmem:[%s3 + $0x3e0] sm:$0xff]
    %v411 = vld [vmem:[%s3 + $0x3e8] sm:$0xff]
    %v412 = vld [vmem:[%s3 + $0x3f0] sm:$0xff]
    %v413 = vld [vmem:[%s3 + $0x3f8] sm:$0xff]
    %v414 = vld [vmem:[%s3 + $0x400] sm:$0xff]
    %v415 = vld [vmem:[%s3 + $0x408] sm:$0xff]
    %v416 = vld [vmem:[%s3 + $0x410] sm:$0xff]
    %v417 = vld [vmem:[%s3 + $0x418] sm:$0xff]
    %v418 = vld [vmem:[%s3 + $0x420] sm:$0xff]
    %v419 = vld [vmem:[%s3 + $0x428] sm:$0xff]
    %v420 = vld [vmem:[%s3 + $0x430] sm:$0xff]
    %v421 = vld [vmem:[%s3 + $0x438] sm:$0xff]
    %v422 = vld [vmem:[%s3 + $0x440] sm:$0xff]
    %v423 = vld [vmem:[%s3 + $0x448] sm:$0xff]
    %v424 = vld [vmem:[%s3 + $0x450] sm:$0xff]
    %v425 = vld [vmem:[%s3 + $0x458] sm:$0xff]
    %v426 = vld [vmem:[%s3 + $0x460] sm:$0xff]
    %v427 = vld [vmem:[%s3 + $0x468] sm:$0xff]
    %v428 = vld [vmem:[%s3 + $0x470] sm:$0xff]
    %v429 = vld [vmem:[%s3 + $0x478] sm:$0xff]
    %v430 = vld [vmem:[%s3 + $0x480] sm:$0xff]
    %v431 = vld [vmem:[%s3 + $0x488] sm:$0xff]
    %v432 = vld [vmem:[%s3 + $0x490] sm:$0xff]
    %v433 = vld [vmem:[%s3 + $0x498] sm:$0xff]
    %v434 = vld [vmem:[%s3 + $0x4a0] sm:$0xff]
    %v435 = vld [vmem:[%s3 + $0x4a8] sm:$0xff]
    %v436 = vld [vmem:[%s3 + $0x4b0] sm:$0xff]
    %v437 = vld [vmem:[%s3 + $0x4b8] sm:$0xff]
    %v438 = vld [vmem:[%s3 + $0x4c0] sm:$0xff]
    %v439 = vld [vmem:[%s3 + $0x4c8] sm:$0xff]
    %v440 = vld [vmem:[%s3 + $0x4d0] sm:$0xff]
    %v441 = vld [vmem:[%s3 + $0x4d8] sm:$0xff]
    %v442 = vld [vmem:[%s3 + $0x4e0] sm:$0xff]
    %v443 = vld [vmem:[%s3 + $0x4e8] sm:$0xff]
    %v444 = vld [vmem:[%s3 + $0x4f0] sm:$0xff]
    %v445 = vld [vmem:[%s3 + $0x4f8] sm:$0xff]
    %v446 = vld [vmem:[%s3 + $0x500] sm:$0xff]
    %v447 = vld [vmem:[%s3 + $0x508] sm:$0xff]
    %v448 = vld [vmem:[%s3 + $0x510] sm:$0xff]
    %v449 = vld [vmem:[%s3 + $0x518] sm:$0xff]
    %v450 = vld [vmem:[%s3 + $0x520] sm:$0xff]
    %v451 = vld [vmem:[%s3 + $0x528] sm:$0xff]
    %v452 = vld [vmem:[%s3 + $0x530] sm:$0xff]
    %v453 = vld [vmem:[%s3 + $0x538] sm:$0xff]
    %v454 = vld [vmem:[%s3 + $0x540] sm:$0xff]
    %v455 = vld [vmem:[%s3 + $0x548] sm:$0xff]
    %v456 = vld [vmem:[%s3 + $0x550] sm:$0xff]
    %v457 = vld [vmem:[%s3 + $0x558] sm:$0xff]
    %v458 = vld [vmem:[%s3 + $0x560] sm:$0xff]
    %v459 = vld [vmem:[%s3 + $0x568] sm:$0xff]
    %v460 = vld [vmem:[%s3 + $0x570] sm:$0xff]
    %v461 = vld [vmem:[%s3 + $0x578] sm:$0xff]
    %v462 = vld [vmem:[%s3 + $0x580] sm:$0xff]
    %v463 = vld [vmem:[%s3 + $0x588] sm:$0xff]
    %v464 = vld [vmem:[%s3 + $0x590] sm:$0xff]
    %v465 = vld [vmem:[%s3 + $0x598] sm:$0xff]
    %v466 = vld [vmem:[%s3 + $0x5a0] sm:$0xff]
    %v467 = vld [vmem:[%s3 + $0x5a8] sm:$0xff]
    %v468 = vld [vmem:[%s3 + $0x5b0] sm:$0xff]
    %v469 = vld [vmem:[%s3 + $0x5b8] sm:$0xff]
    %v470 = vld [vmem:[%s3 + $0x5c0] sm:$0xff]
    %v471 = vld [vmem:[%s3 + $0x5c8] sm:$0xff]
    %v472 = vld [vmem:[%s3 + $0x5d0] sm:$0xff]
    %v473 = vld [vmem:[%s3 + $0x5d8] sm:$0xff]
    %v474 = vld [vmem:[%s3 + $0x5e0] sm:$0xff]
    %v475 = vld [vmem:[%s3 + $0x5e8] sm:$0xff]
    %v476 = vld [vmem:[%s3 + $0x5f0] sm:$0xff]
    %v477 = vld [vmem:[%s3 + $0x5f8] sm:$0xff]
    %v478 = vld [vmem:[%s3 + $0x600] sm:$0xff]
    %v479 = vld [vmem:[%s3 + $0x608] sm:$0xff]
    %v480 = vld [vmem:[%s3 + $0x610] sm:$0xff]
    %v481 = vld [vmem:[%s3 + $0x618] sm:$0xff]
    %v482 = vld [vmem:[%s3 + $0x620] sm:$0xff]
    %v483 = vld [vmem:[%s3 + $0x628] sm:$0xff]
    %v484 = vld [vmem:[%s3 + $0x630] sm:$0xff]
    %v485 = vld [vmem:[%s3 + $0x638] sm:$0xff]
    %v486 = vld [vmem:[%s3 + $0x640] sm:$0xff]
    %v487 = vld [vmem:[%s3 + $0x648] sm:$0xff]
    %v488 = vld [vmem:[%s3 + $0x650] sm:$0xff]
    %v489 = vld [vmem:[%s3 + $0x658] sm:$0xff]
    %v490 = vld [vmem:[%s3 + $0x660] sm:$0xff]
    %v491 = vld [vmem:[%s3 + $0x668] sm:$0xff]
    %v492 = vld [vmem:[%s3 + $0x670] sm:$0xff]
    %v493 = vld [vmem:[%s3 + $0x678] sm:$0xff]
    %v494 = vld [vmem:[%s3 + $0x680] sm:$0xff]
    %v495 = vld [vmem:[%s3 + $0x688] sm:$0xff]
    %v496 = vld [vmem:[%s3 + $0x690] sm:$0xff]
    %v497 = vld [vmem:[%s3 + $0x698] sm:$0xff]
    %v498 = vld [vmem:[%s3 + $0x6a0] sm:$0xff]
    %v499 = vld [vmem:[%s3 + $0x6a8] sm:$0xff]
    %v500 = vld [vmem:[%s3 + $0x6b0] sm:$0xff]
    %v501 = vld [vmem:[%s3 + $0x6b8] sm:$0xff]
    %v502 = vld [vmem:[%s3 + $0x6c0] sm:$0xff]
    %v503 = vld [vmem:[%s3 + $0x6c8] sm:$0xff]
    %v504 = vld [vmem:[%s3 + $0x6d0] sm:$0xff]
    %v505 = vld [vmem:[%s3 + $0x6d8] sm:$0xff]
    %v506 = vld [vmem:[%s3 + $0x6e0] sm:$0xff]
    %v507 = vld [vmem:[%s3 + $0x6e8] sm:$0xff]
    %v508 = vld [vmem:[%s3 + $0x6f0] sm:$0xff]
    %v509 = vld [vmem:[%s3 + $0x6f8] sm:$0xff]
    %v510 = vld [vmem:[%s3 + $0x700] sm:$0xff]
    %v511 = vld [vmem:[%s3 + $0x708] sm:$0xff]
    %v512 = vld [vmem:[%s3 + $0x710] sm:$0xff]
    %v513 = vld [vmem:[%s3 + $0x718] sm:$0xff]
    %v514 = vld [vmem:[%s3 + $0x720] sm:$0xff]
    %v515 = vld [vmem:[%s3 + $0x728] sm:$0xff]
    %v516 = vld [vmem:[%s3 + $0x730] sm:$0xff]
    %v517 = vld [vmem:[%s3 + $0x738] sm:$0xff]
    %v518 = vld [vmem:[%s3 + $0x740] sm:$0xff]
    %v519 = vld [vmem:[%s3 + $0x748] sm:$0xff]
    %v520 = vld [vmem:[%s3 + $0x750] sm:$0xff]
    %v521 = vld [vmem:[%s3 + $0x758] sm:$0xff]
    %v522 = vld [vmem:[%s3 + $0x760] sm:$0xff]
    %v523 = vld [vmem:[%s3 + $0x768] sm:$0xff]
    %v524 = vld [vmem:[%s3 + $0x770] sm:$0xff]
    %v525 = vld [vmem:[%s3 + $0x778] sm:$0xff]
    %v526 = vld [vmem:[%s3 + $0x780] sm:$0xff]
    %v527 = vld [vmem:[%s3 + $0x788] sm:$0xff]
    %v528 = vld [vmem:[%s3 + $0x790] sm:$0xff]
    %v529 = vld [vmem:[%s3 + $0x798] sm:$0xff]
    %v530 = vld [vmem:[%s3 + $0x7a0] sm:$0xff]
    %v531 = vld [vmem:[%s3 + $0x7a8] sm:$0xff]
    %v532 = vld [vmem:[%s3 + $0x7b0] sm:$0xff]
    %v533 = vld [vmem:[%s3 + $0x7b8] sm:$0xff]
    %v534 = vld [vmem:[%s3 + $0x7c0] sm:$0xff]
    %v535 = vld [vmem:[%s3 + $0x7c8] sm:$0xff]
    %v536 = vld [vmem:[%s3 + $0x7d0] sm:$0xff]
    %v537 = vld [vmem:[%s3 + $0x7d8] sm:$0xff]
    %v538 = vld [vmem:[%s3 + $0x7e0] sm:$0xff]
    %v539 = vld [vmem:[%s3 + $0x7e8] sm:$0xff]
    %v540 = vld [vmem:[%s3 + $0x7f0] sm:$0xff]
    %v541 = vld [vmem:[%s3 + $0x7f8] sm:$0xff]
    %v546 = vcombine.high %v282, %v282
    %v548 = vunpack.c.l.s4 1983009808
    %v549 = vunpack.c.0.s8 %v548
    %v550 = vlaneseq
    %v551 = vshrl.u32 %v550, 7
    %v552 = vsub.s32 %v549, %v551
    %v553 = vrot.slane %v282, %v552
    %v555 = vunpack.c.l.s4 1983009808
    %v556 = vunpack.c.0.s8 %v555
    %v557 = vlaneseq
    %v558 = vshrl.u32 %v557, 7
    %v559 = vsub.s32 %v556, %v558
    %v560 = vrot.slane %v546, %v559
    %v561 = vcombine.high %v553, %v553
    %v562 = vcombine.high %v560, %v560
    %v563 = vcombine.high %v283, %v283
    %v565 = vunpack.c.l.s4 1983009808
    %v566 = vunpack.c.0.s8 %v565
    %v567 = vlaneseq
    %v568 = vshrl.u32 %v567, 7
    %v569 = vsub.s32 %v566, %v568
    %v570 = vrot.slane %v283, %v569
    %v572 = vunpack.c.l.s4 1983009808
    %v573 = vunpack.c.0.s8 %v572
    %v574 = vlaneseq
    %v575 = vshrl.u32 %v574, 7
    %v576 = vsub.s32 %v573, %v575
    %v577 = vrot.slane %v563, %v576
    %v578 = vcombine.high %v570, %v570
    %v579 = vcombine.high %v577, %v577
    %v580 = vcombine.high %v284, %v284
    %v582 = vunpack.c.l.s4 1983009808
    %v583 = vunpack.c.0.s8 %v582
    %v584 = vlaneseq
    %v585 = vshrl.u32 %v584, 7
    %v586 = vsub.s32 %v583, %v585
    %v587 = vrot.slane %v284, %v586
    %v589 = vunpack.c.l.s4 1983009808
    %v590 = vunpack.c.0.s8 %v589
    %v591 = vlaneseq
    %v592 = vshrl.u32 %v591, 7
    %v593 = vsub.s32 %v590, %v592
    %v594 = vrot.slane %v580, %v593
    %v595 = vcombine.high %v587, %v587
    %v596 = vcombine.high %v594, %v594
    %v597 = vcombine.high %v285, %v285
    %v599 = vunpack.c.l.s4 1983009808
    %v600 = vunpack.c.0.s8 %v599
    %v601 = vlaneseq
    %v602 = vshrl.u32 %v601, 7
    %v603 = vsub.s32 %v600, %v602
    %v604 = vrot.slane %v285, %v603
    %v606 = vunpack.c.l.s4 1983009808
    %v607 = vunpack.c.0.s8 %v606
    %v608 = vlaneseq
    %v609 = vshrl.u32 %v608, 7
    %v610 = vsub.s32 %v607, %v609
    %v611 = vrot.slane %v597, %v610
    %v612 = vcombine.high %v604, %v604
    %v613 = vcombine.high %v611, %v611
    %630 = vmatprep.subr.mxu0 0.0
    %631 = vmatpush1.msra.mxu0 %v286
    %632 = vmatprep.subr.mxu0 0.0
    %633 = vmatpush1.msra.mxu0 %v287
    %634 = vmatprep.subr.mxu0 0.0
    %635 = vmatpush1.msra.mxu0 %v288
    %636 = vmatprep.subr.mxu0 0.0
    %637 = vmatpush1.msra.mxu0 %v289
    %638 = vmatprep.subr.mxu0 0.0
    %639 = vmatpush1.msra.mxu0 %v290
    %640 = vmatprep.subr.mxu0 0.0
    %641 = vmatpush1.msra.mxu0 %v291
    %642 = vmatprep.subr.mxu0 0.0
    %643 = vmatpush1.msra.mxu0 %v292
    %644 = vmatprep.subr.mxu0 0.0
    %645 = vmatpush1.msra.mxu0 %v293
    %646 = vmatprep.subr.mxu0 0.0
    %647 = vmatpush1.msra.mxu0 %v294
    %648 = vmatprep.subr.mxu0 0.0
    %649 = vmatpush1.msra.mxu0 %v295
    %650 = vmatprep.subr.mxu0 0.0
    %651 = vmatpush1.msra.mxu0 %v296
    %652 = vmatprep.subr.mxu0 0.0
    %653 = vmatpush1.msra.mxu0 %v297
    %654 = vmatprep.subr.mxu0 0.0
    %655 = vmatpush1.msra.mxu0 %v298
    %656 = vmatprep.subr.mxu0 0.0
    %657 = vmatpush1.msra.mxu0 %v299
    %658 = vmatprep.subr.mxu0 0.0
    %659 = vmatpush1.msra.mxu0 %v300
    %660 = vmatprep.subr.mxu0 0.0
    %661 = vmatpush1.msra.mxu0 %v301
    %662 = vmatprep.subr.mxu0 0.0
    %663 = vmatpush1.msra.mxu0 %v302
    %664 = vmatprep.subr.mxu0 0.0
    %665 = vmatpush1.msra.mxu0 %v303
    %666 = vmatprep.subr.mxu0 0.0
    %667 = vmatpush1.msra.mxu0 %v304
    %668 = vmatprep.subr.mxu0 0.0
    %669 = vmatpush1.msra.mxu0 %v305
    %670 = vmatprep.subr.mxu0 0.0
    %671 = vmatpush1.msra.mxu0 %v306
    %672 = vmatprep.subr.mxu0 0.0
    %673 = vmatpush1.msra.mxu0 %v307
    %674 = vmatprep.subr.mxu0 0.0
    %675 = vmatpush1.msra.mxu0 %v308
    %676 = vmatprep.subr.mxu0 0.0
    %677 = vmatpush1.msra.mxu0 %v309
    %678 = vmatprep.subr.mxu0 0.0
    %679 = vmatpush1.msra.mxu0 %v310
    %680 = vmatprep.subr.mxu0 0.0
    %681 = vmatpush1.msra.mxu0 %v311
    %682 = vmatprep.subr.mxu0 0.0
    %683 = vmatpush1.msra.mxu0 %v312
    %684 = vmatprep.subr.mxu0 0.0
    %685 = vmatpush1.msra.mxu0 %v313
    %686 = vmatprep.subr.mxu0 0.0
    %687 = vmatpush1.msra.mxu0 %v314
    %688 = vmatprep.subr.mxu0 0.0
    %689 = vmatpush1.msra.mxu0 %v315
    %690 = vmatprep.subr.mxu0 0.0
    %691 = vmatpush1.msra.mxu0 %v316
    %692 = vmatprep.subr.mxu0 0.0
    %693 = vmatpush1.msra.mxu0 %v317
    %694 = vmatprep.mubr.f32.mxu0 %v561
    %695 = vmatmul.mubr.f32.gmra.mrb[0].mxu0 %v553
    %v696 = vpop.f32.mrb[0].mxu0
    %v697 = vadd.f32 0.0, %v696
    %v698 = vpop.f32.mrb[0].mxu0
    %699 = vdwg.mxu0
    %700 = vmatprep.subr.mxu0 0.0
    %701 = vmatpush1.msra.mxu0 %v318
    %702 = vmatprep.subr.mxu0 0.0
    %703 = vmatpush1.msra.mxu0 %v319
    %704 = vmatprep.subr.mxu0 0.0
    %705 = vmatpush1.msra.mxu0 %v320
    %706 = vmatprep.subr.mxu0 0.0
    %707 = vmatpush1.msra.mxu0 %v321
    %708 = vmatprep.subr.mxu0 0.0
    %709 = vmatpush1.msra.mxu0 %v322
    %710 = vmatprep.subr.mxu0 0.0
    %711 = vmatpush1.msra.mxu0 %v323
    %712 = vmatprep.subr.mxu0 0.0
    %713 = vmatpush1.msra.mxu0 %v324
    %714 = vmatprep.subr.mxu0 0.0
    %715 = vmatpush1.msra.mxu0 %v325
    %716 = vmatprep.subr.mxu0 0.0
    %717 = vmatpush1.msra.mxu0 %v326
    %718 = vmatprep.subr.mxu0 0.0
    %719 = vmatpush1.msra.mxu0 %v327
    %720 = vmatprep.subr.mxu0 0.0
    %721 = vmatpush1.msra.mxu0 %v328
    %722 = vmatprep.subr.mxu0 0.0
    %723 = vmatpush1.msra.mxu0 %v329
    %724 = vmatprep.subr.mxu0 0.0
    %725 = vmatpush1.msra.mxu0 %v330
    %726 = vmatprep.subr.mxu0 0.0
    %727 = vmatpush1.msra.mxu0 %v331
    %728 = vmatprep.subr.mxu0 0.0
    %729 = vmatpush1.msra.mxu0 %v332
    %730 = vmatprep.subr.mxu0 0.0
    %731 = vmatpush1.msra.mxu0 %v333
    %732 = vmatprep.subr.mxu0 0.0
    %733 = vmatpush1.msra.mxu0 %v334
    %734 = vmatprep.subr.mxu0 0.0
    %735 = vmatpush1.msra.mxu0 %v335
    %736 = vmatprep.subr.mxu0 0.0
    %737 = vmatpush1.msra.mxu0 %v336
    %738 = vmatprep.subr.mxu0 0.0
    %739 = vmatpush1.msra.mxu0 %v337
    %740 = vmatprep.subr.mxu0 0.0
    %741 = vmatpush1.msra.mxu0 %v338
    %742 = vmatprep.subr.mxu0 0.0
    %743 = vmatpush1.msra.mxu0 %v339
    %744 = vmatprep.subr.mxu0 0.0
    %745 = vmatpush1.msra.mxu0 %v340
    %746 = vmatprep.subr.mxu0 0.0
    %747 = vmatpush1.msra.mxu0 %v341
    %748 = vmatprep.subr.mxu0 0.0
    %749 = vmatpush1.msra.mxu0 %v342
    %750 = vmatprep.subr.mxu0 0.0
    %751 = vmatpush1.msra.mxu0 %v343
    %752 = vmatprep.subr.mxu0 0.0
    %753 = vmatpush1.msra.mxu0 %v344
    %754 = vmatprep.subr.mxu0 0.0
    %755 = vmatpush1.msra.mxu0 %v345
    %756 = vmatprep.subr.mxu0 0.0
    %757 = vmatpush1.msra.mxu0 %v346
    %758 = vmatprep.subr.mxu0 0.0
    %759 = vmatpush1.msra.mxu0 %v347
    %760 = vmatprep.subr.mxu0 0.0
    %761 = vmatpush1.msra.mxu0 %v348
    %762 = vmatprep.subr.mxu0 0.0
    %763 = vmatpush1.msra.mxu0 %v349
    %764 = vmatprep.mubr.f32.mxu0 %v562
    %765 = vmatmul.mubr.f32.gmra.mrb[0].mxu0 %v560
    %v766 = vpop.f32.mrb[0].mxu0
    %v767 = vadd.f32 %v697, %v766
    %v768 = vpop.f32.mrb[0].mxu0
    %769 = vdwg.mxu0
    %770 = vmatprep.subr.mxu0 0.0
    %771 = vmatpush1.msra.mxu0 %v350
    %772 = vmatprep.subr.mxu0 0.0
    %773 = vmatpush1.msra.mxu0 %v351
    %774 = vmatprep.subr.mxu0 0.0
    %775 = vmatpush1.msra.mxu0 %v352
    %776 = vmatprep.subr.mxu0 0.0
    %777 = vmatpush1.msra.mxu0 %v353
    %778 = vmatprep.subr.mxu0 0.0
    %779 = vmatpush1.msra.mxu0 %v354
    %780 = vmatprep.subr.mxu0 0.0
    %781 = vmatpush1.msra.mxu0 %v355
    %782 = vmatprep.subr.mxu0 0.0
    %783 = vmatpush1.msra.mxu0 %v356
    %784 = vmatprep.subr.mxu0 0.0
    %785 = vmatpush1.msra.mxu0 %v357
    %786 = vmatprep.subr.mxu0 0.0
    %787 = vmatpush1.msra.mxu0 %v358
    %788 = vmatprep.subr.mxu0 0.0
    %789 = vmatpush1.msra.mxu0 %v359
    %790 = vmatprep.subr.mxu0 0.0
    %791 = vmatpush1.msra.mxu0 %v360
    %792 = vmatprep.subr.mxu0 0.0
    %793 = vmatpush1.msra.mxu0 %v361
    %794 = vmatprep.subr.mxu0 0.0
    %795 = vmatpush1.msra.mxu0 %v362
    %796 = vmatprep.subr.mxu0 0.0
    %797 = vmatpush1.msra.mxu0 %v363
    %798 = vmatprep.subr.mxu0 0.0
    %799 = vmatpush1.msra.mxu0 %v364
    %800 = vmatprep.subr.mxu0 0.0
    %801 = vmatpush1.msra.mxu0 %v365
    %802 = vmatprep.subr.mxu0 0.0
    %803 = vmatpush1.msra.mxu0 %v366
    %804 = vmatprep.subr.mxu0 0.0
    %805 = vmatpush1.msra.mxu0 %v367
    %806 = vmatprep.subr.mxu0 0.0
    %807 = vmatpush1.msra.mxu0 %v368
    %808 = vmatprep.subr.mxu0 0.0
    %809 = vmatpush1.msra.mxu0 %v369
    %810 = vmatprep.subr.mxu0 0.0
    %811 = vmatpush1.msra.mxu0 %v370
    %812 = vmatprep.subr.mxu0 0.0
    %813 = vmatpush1.msra.mxu0 %v371
    %814 = vmatprep.subr.mxu0 0.0
    %815 = vmatpush1.msra.mxu0 %v372
    %816 = vmatprep.subr.mxu0 0.0
    %817 = vmatpush1.msra.mxu0 %v373
    %818 = vmatprep.subr.mxu0 0.0
    %819 = vmatpush1.msra.mxu0 %v374
    %820 = vmatprep.subr.mxu0 0.0
    %821 = vmatpush1.msra.mxu0 %v375
    %822 = vmatprep.subr.mxu0 0.0
    %823 = vmatpush1.msra.mxu0 %v376
    %824 = vmatprep.subr.mxu0 0.0
    %825 = vmatpush1.msra.mxu0 %v377
    %826 = vmatprep.subr.mxu0 0.0
    %827 = vmatpush1.msra.mxu0 %v378
    %828 = vmatprep.subr.mxu0 0.0
    %829 = vmatpush1.msra.mxu0 %v379
    %830 = vmatprep.subr.mxu0 0.0
    %831 = vmatpush1.msra.mxu0 %v380
    %832 = vmatprep.subr.mxu0 0.0
    %833 = vmatpush1.msra.mxu0 %v381
    %834 = vmatprep.mubr.f32.mxu0 %v578
    %835 = vmatmul.mubr.f32.gmra.mrb[0].mxu0 %v570
    %v836 = vpop.f32.mrb[0].mxu0
    %v837 = vadd.f32 %v767, %v836
    %v838 = vpop.f32.mrb[0].mxu0
    %839 = vdwg.mxu0
    %840 = vmatprep.subr.mxu0 0.0
    %841 = vmatpush1.msra.mxu0 %v382
    %842 = vmatprep.subr.mxu0 0.0
    %843 = vmatpush1.msra.mxu0 %v383
    %844 = vmatprep.subr.mxu0 0.0
    %845 = vmatpush1.msra.mxu0 %v384
    %846 = vmatprep.subr.mxu0 0.0
    %847 = vmatpush1.msra.mxu0 %v385
    %848 = vmatprep.subr.mxu0 0.0
    %849 = vmatpush1.msra.mxu0 %v386
    %850 = vmatprep.subr.mxu0 0.0
    %851 = vmatpush1.msra.mxu0 %v387
    %852 = vmatprep.subr.mxu0 0.0
    %853 = vmatpush1.msra.mxu0 %v388
    %854 = vmatprep.subr.mxu0 0.0
    %855 = vmatpush1.msra.mxu0 %v389
    %856 = vmatprep.subr.mxu0 0.0
    %857 = vmatpush1.msra.mxu0 %v390
    %858 = vmatprep.subr.mxu0 0.0
    %859 = vmatpush1.msra.mxu0 %v391
    %860 = vmatprep.subr.mxu0 0.0
    %861 = vmatpush1.msra.mxu0 %v392
    %862 = vmatprep.subr.mxu0 0.0
    %863 = vmatpush1.msra.mxu0 %v393
    %864 = vmatprep.subr.mxu0 0.0
    %865 = vmatpush1.msra.mxu0 %v394
    %866 = vmatprep.subr.mxu0 0.0
    %867 = vmatpush1.msra.mxu0 %v395
    %868 = vmatprep.subr.mxu0 0.0
    %869 = vmatpush1.msra.mxu0 %v396
    %870 = vmatprep.subr.mxu0 0.0
    %871 = vmatpush1.msra.mxu0 %v397
    %872 = vmatprep.subr.mxu0 0.0
    %873 = vmatpush1.msra.mxu0 %v398
    %874 = vmatprep.subr.mxu0 0.0
    %875 = vmatpush1.msra.mxu0 %v399
    %876 = vmatprep.subr.mxu0 0.0
    %877 = vmatpush1.msra.mxu0 %v400
    %878 = vmatprep.subr.mxu0 0.0
    %879 = vmatpush1.msra.mxu0 %v401
    %880 = vmatprep.subr.mxu0 0.0
    %881 = vmatpush1.msra.mxu0 %v402
    %882 = vmatprep.subr.mxu0 0.0
    %883 = vmatpush1.msra.mxu0 %v403
    %884 = vmatprep.subr.mxu0 0.0
    %885 = vmatpush1.msra.mxu0 %v404
    %886 = vmatprep.subr.mxu0 0.0
    %887 = vmatpush1.msra.mxu0 %v405
    %888 = vmatprep.subr.mxu0 0.0
    %889 = vmatpush1.msra.mxu0 %v406
    %890 = vmatprep.subr.mxu0 0.0
    %891 = vmatpush1.msra.mxu0 %v407
    %892 = vmatprep.subr.mxu0 0.0
    %893 = vmatpush1.msra.mxu0 %v408
    %894 = vmatprep.subr.mxu0 0.0
    %895 = vmatpush1.msra.mxu0 %v409
    %896 = vmatprep.subr.mxu0 0.0
    %897 = vmatpush1.msra.mxu0 %v410
    %898 = vmatprep.subr.mxu0 0.0
    %899 = vmatpush1.msra.mxu0 %v411
    %900 = vmatprep.subr.mxu0 0.0
    %901 = vmatpush1.msra.mxu0 %v412
    %902 = vmatprep.subr.mxu0 0.0
    %903 = vmatpush1.msra.mxu0 %v413
    %904 = vmatprep.mubr.f32.mxu0 %v579
    %905 = vmatmul.mubr.f32.gmra.mrb[0].mxu0 %v577
    %v906 = vpop.f32.mrb[0].mxu0
    %v907 = vadd.f32 %v837, %v906
    %v908 = vpop.f32.mrb[0].mxu0
    %909 = vdwg.mxu0
    %910 = vmatprep.subr.mxu0 0.0
    %911 = vmatpush1.msra.mxu0 %v414
    %912 = vmatprep.subr.mxu0 0.0
    %913 = vmatpush1.msra.mxu0 %v415
    %914 = vmatprep.subr.mxu0 0.0
    %915 = vmatpush1.msra.mxu0 %v416
    %916 = vmatprep.subr.mxu0 0.0
    %917 = vmatpush1.msra.mxu0 %v417
    %918 = vmatprep.subr.mxu0 0.0
    %919 = vmatpush1.msra.mxu0 %v418
    %920 = vmatprep.subr.mxu0 0.0
    %921 = vmatpush1.msra.mxu0 %v419
    %922 = vmatprep.subr.mxu0 0.0
    %923 = vmatpush1.msra.mxu0 %v420
    %924 = vmatprep.subr.mxu0 0.0
    %925 = vmatpush1.msra.mxu0 %v421
    %926 = vmatprep.subr.mxu0 0.0
    %927 = vmatpush1.msra.mxu0 %v422
    %928 = vmatprep.subr.mxu0 0.0
    %929 = vmatpush1.msra.mxu0 %v423
    %930 = vmatprep.subr.mxu0 0.0
    %931 = vmatpush1.msra.mxu0 %v424
    %932 = vmatprep.subr.mxu0 0.0
    %933 = vmatpush1.msra.mxu0 %v425
    %934 = vmatprep.subr.mxu0 0.0
    %935 = vmatpush1.msra.mxu0 %v426
    %936 = vmatprep.subr.mxu0 0.0
    %937 = vmatpush1.msra.mxu0 %v427
    %938 = vmatprep.subr.mxu0 0.0
    %939 = vmatpush1.msra.mxu0 %v428
    %940 = vmatprep.subr.mxu0 0.0
    %941 = vmatpush1.msra.mxu0 %v429
    %942 = vmatprep.subr.mxu0 0.0
    %943 = vmatpush1.msra.mxu0 %v430
    %944 = vmatprep.subr.mxu0 0.0
    %945 = vmatpush1.msra.mxu0 %v431
    %946 = vmatprep.subr.mxu0 0.0
    %947 = vmatpush1.msra.mxu0 %v432
    %948 = vmatprep.subr.mxu0 0.0
    %949 = vmatpush1.msra.mxu0 %v433
    %950 = vmatprep.subr.mxu0 0.0
    %951 = vmatpush1.msra.mxu0 %v434
    %952 = vmatprep.subr.mxu0 0.0
    %953 = vmatpush1.msra.mxu0 %v435
    %954 = vmatprep.subr.mxu0 0.0
    %955 = vmatpush1.msra.mxu0 %v436
    %956 = vmatprep.subr.mxu0 0.0
    %957 = vmatpush1.msra.mxu0 %v437
    %958 = vmatprep.subr.mxu0 0.0
    %959 = vmatpush1.msra.mxu0 %v438
    %960 = vmatprep.subr.mxu0 0.0
    %961 = vmatpush1.msra.mxu0 %v439
    %962 = vmatprep.subr.mxu0 0.0
    %963 = vmatpush1.msra.mxu0 %v440
    %964 = vmatprep.subr.mxu0 0.0
    %965 = vmatpush1.msra.mxu0 %v441
    %966 = vmatprep.subr.mxu0 0.0
    %967 = vmatpush1.msra.mxu0 %v442
    %968 = vmatprep.subr.mxu0 0.0
    %969 = vmatpush1.msra.mxu0 %v443
    %970 = vmatprep.subr.mxu0 0.0
    %971 = vmatpush1.msra.mxu0 %v444
    %972 = vmatprep.subr.mxu0 0.0
    %973 = vmatpush1.msra.mxu0 %v445
    %974 = vmatprep.mubr.f32.mxu0 %v595
    %975 = vmatmul.mubr.f32.gmra.mrb[0].mxu0 %v587
    %v976 = vpop.f32.mrb[0].mxu0
    %v977 = vadd.f32 %v907, %v976
    %v978 = vpop.f32.mrb[0].mxu0
    %979 = vdwg.mxu0
    %980 = vmatprep.subr.mxu0 0.0
    %981 = vmatpush1.msra.mxu0 %v446
    %982 = vmatprep.subr.mxu0 0.0
    %983 = vmatpush1.msra.mxu0 %v447
    %984 = vmatprep.subr.mxu0 0.0
    %985 = vmatpush1.msra.mxu0 %v448
    %986 = vmatprep.subr.mxu0 0.0
    %987 = vmatpush1.msra.mxu0 %v449
    %988 = vmatprep.subr.mxu0 0.0
    %989 = vmatpush1.msra.mxu0 %v450
    %990 = vmatprep.subr.mxu0 0.0
    %991 = vmatpush1.msra.mxu0 %v451
    %992 = vmatprep.subr.mxu0 0.0
    %993 = vmatpush1.msra.mxu0 %v452
    %994 = vmatprep.subr.mxu0 0.0
    %995 = vmatpush1.msra.mxu0 %v453
    %996 = vmatprep.subr.mxu0 0.0
    %997 = vmatpush1.msra.mxu0 %v454
    %998 = vmatprep.subr.mxu0 0.0
    %999 = vmatpush1.msra.mxu0 %v455
    %1000 = vmatprep.subr.mxu0 0.0
    %1001 = vmatpush1.msra.mxu0 %v456
    %1002 = vmatprep.subr.mxu0 0.0
    %1003 = vmatpush1.msra.mxu0 %v457
    %1004 = vmatprep.subr.mxu0 0.0
    %1005 = vmatpush1.msra.mxu0 %v458
    %1006 = vmatprep.subr.mxu0 0.0
    %1007 = vmatpush1.msra.mxu0 %v459
    %1008 = vmatprep.subr.mxu0 0.0
    %1009 = vmatpush1.msra.mxu0 %v460
    %1010 = vmatprep.subr.mxu0 0.0
    %1011 = vmatpush1.msra.mxu0 %v461
    %1012 = vmatprep.subr.mxu0 0.0
    %1013 = vmatpush1.msra.mxu0 %v462
    %1014 = vmatprep.subr.mxu0 0.0
    %1015 = vmatpush1.msra.mxu0 %v463
    %1016 = vmatprep.subr.mxu0 0.0
    %1017 = vmatpush1.msra.mxu0 %v464
    %1018 = vmatprep.subr.mxu0 0.0
    %1019 = vmatpush1.msra.mxu0 %v465
    %1020 = vmatprep.subr.mxu0 0.0
    %1021 = vmatpush1.msra.mxu0 %v466
    %1022 = vmatprep.subr.mxu0 0.0
    %1023 = vmatpush1.msra.mxu0 %v467
    %1024 = vmatprep.subr.mxu0 0.0
    %1025 = vmatpush1.msra.mxu0 %v468
    %1026 = vmatprep.subr.mxu0 0.0
    %1027 = vmatpush1.msra.mxu0 %v469
    %1028 = vmatprep.subr.mxu0 0.0
    %1029 = vmatpush1.msra.mxu0 %v470
    %1030 = vmatprep.subr.mxu0 0.0
    %1031 = vmatpush1.msra.mxu0 %v471
    %1032 = vmatprep.subr.mxu0 0.0
    %1033 = vmatpush1.msra.mxu0 %v472
    %1034 = vmatprep.subr.mxu0 0.0
    %1035 = vmatpush1.msra.mxu0 %v473
    %1036 = vmatprep.subr.mxu0 0.0
    %1037 = vmatpush1.msra.mxu0 %v474
    %1038 = vmatprep.subr.mxu0 0.0
    %1039 = vmatpush1.msra.mxu0 %v475
    %1040 = vmatprep.subr.mxu0 0.0
    %1041 = vmatpush1.msra.mxu0 %v476
    %1042 = vmatprep.subr.mxu0 0.0
    %1043 = vmatpush1.msra.mxu0 %v477
    %1044 = vmatprep.mubr.f32.mxu0 %v596
    %1045 = vmatmul.mubr.f32.gmra.mrb[0].mxu0 %v594
    %v1046 = vpop.f32.mrb[0].mxu0
    %v1047 = vadd.f32 %v977, %v1046
    %v1048 = vpop.f32.mrb[0].mxu0
    %1049 = vdwg.mxu0
    %1050 = vmatprep.subr.mxu0 0.0
    %1051 = vmatpush1.msra.mxu0 %v478
    %1052 = vmatprep.subr.mxu0 0.0
    %1053 = vmatpush1.msra.mxu0 %v479
    %1054 = vmatprep.subr.mxu0 0.0
    %1055 = vmatpush1.msra.mxu0 %v480
    %1056 = vmatprep.subr.mxu0 0.0
    %1057 = vmatpush1.msra.mxu0 %v481
    %1058 = vmatprep.subr.mxu0 0.0
    %1059 = vmatpush1.msra.mxu0 %v482
    %1060 = vmatprep.subr.mxu0 0.0
    %1061 = vmatpush1.msra.mxu0 %v483
    %1062 = vmatprep.subr.mxu0 0.0
    %1063 = vmatpush1.msra.mxu0 %v484
    %1064 = vmatprep.subr.mxu0 0.0
    %1065 = vmatpush1.msra.mxu0 %v485
    %1066 = vmatprep.subr.mxu0 0.0
    %1067 = vmatpush1.msra.mxu0 %v486
    %1068 = vmatprep.subr.mxu0 0.0
    %1069 = vmatpush1.msra.mxu0 %v487
    %1070 = vmatprep.subr.mxu0 0.0
    %1071 = vmatpush1.msra.mxu0 %v488
    %1072 = vmatprep.subr.mxu0 0.0
    %1073 = vmatpush1.msra.mxu0 %v489
    %1074 = vmatprep.subr.mxu0 0.0
    %1075 = vmatpush1.msra.mxu0 %v490
    %1076 = vmatprep.subr.mxu0 0.0
    %1077 = vmatpush1.msra.mxu0 %v491
    %1078 = vmatprep.subr.mxu0 0.0
    %1079 = vmatpush1.msra.mxu0 %v492
    %1080 = vmatprep.subr.mxu0 0.0
    %1081 = vmatpush1.msra.mxu0 %v493
    %1082 = vmatprep.subr.mxu0 0.0
    %1083 = vmatpush1.msra.mxu0 %v494
    %1084 = vmatprep.subr.mxu0 0.0
    %1085 = vmatpush1.msra.mxu0 %v495
    %1086 = vmatprep.subr.mxu0 0.0
    %1087 = vmatpush1.msra.mxu0 %v496
    %1088 = vmatprep.subr.mxu0 0.0
    %1089 = vmatpush1.msra.mxu0 %v497
    %1090 = vmatprep.subr.mxu0 0.0
    %1091 = vmatpush1.msra.mxu0 %v498
    %1092 = vmatprep.subr.mxu0 0.0
    %1093 = vmatpush1.msra.mxu0 %v499
    %1094 = vmatprep.subr.mxu0 0.0
    %1095 = vmatpush1.msra.mxu0 %v500
    %1096 = vmatprep.subr.mxu0 0.0
    %1097 = vmatpush1.msra.mxu0 %v501
    %1098 = vmatprep.subr.mxu0 0.0
    %1099 = vmatpush1.msra.mxu0 %v502
    %1100 = vmatprep.subr.mxu0 0.0
    %1101 = vmatpush1.msra.mxu0 %v503
    %1102 = vmatprep.subr.mxu0 0.0
    %1103 = vmatpush1.msra.mxu0 %v504
    %1104 = vmatprep.subr.mxu0 0.0
    %1105 = vmatpush1.msra.mxu0 %v505
    %1106 = vmatprep.subr.mxu0 0.0
    %1107 = vmatpush1.msra.mxu0 %v506
    %1108 = vmatprep.subr.mxu0 0.0
    %1109 = vmatpush1.msra.mxu0 %v507
    %1110 = vmatprep.subr.mxu0 0.0
    %1111 = vmatpush1.msra.mxu0 %v508
    %1112 = vmatprep.subr.mxu0 0.0
    %1113 = vmatpush1.msra.mxu0 %v509
    %1114 = vmatprep.mubr.f32.mxu0 %v612
    %1115 = vmatmul.mubr.f32.gmra.mrb[0].mxu0 %v604
    %v1116 = vpop.f32.mrb[0].mxu0
    %v1117 = vadd.f32 %v1047, %v1116
    %v1118 = vpop.f32.mrb[0].mxu0
    %1119 = vdwg.mxu0
    %1120 = vmatprep.subr.mxu0 0.0
    %1121 = vmatpush1.msra.mxu0 %v510
    %1122 = vmatprep.subr.mxu0 0.0
    %1123 = vmatpush1.msra.mxu0 %v511
    %1124 = vmatprep.subr.mxu0 0.0
    %1125 = vmatpush1.msra.mxu0 %v512
    %1126 = vmatprep.subr.mxu0 0.0
    %1127 = vmatpush1.msra.mxu0 %v513
    %1128 = vmatprep.subr.mxu0 0.0
    %1129 = vmatpush1.msra.mxu0 %v514
    %1130 = vmatprep.subr.mxu0 0.0
    %1131 = vmatpush1.msra.mxu0 %v515
    %1132 = vmatprep.subr.mxu0 0.0
    %1133 = vmatpush1.msra.mxu0 %v516
    %1134 = vmatprep.subr.mxu0 0.0
    %1135 = vmatpush1.msra.mxu0 %v517
    %1136 = vmatprep.subr.mxu0 0.0
    %1137 = vmatpush1.msra.mxu0 %v518
    %1138 = vmatprep.subr.mxu0 0.0
    %1139 = vmatpush1.msra.mxu0 %v519
    %1140 = vmatprep.subr.mxu0 0.0
    %1141 = vmatpush1.msra.mxu0 %v520
    %1142 = vmatprep.subr.mxu0 0.0
    %1143 = vmatpush1.msra.mxu0 %v521
    %1144 = vmatprep.subr.mxu0 0.0
    %1145 = vmatpush1.msra.mxu0 %v522
    %1146 = vmatprep.subr.mxu0 0.0
    %1147 = vmatpush1.msra.mxu0 %v523
    %1148 = vmatprep.subr.mxu0 0.0
    %1149 = vmatpush1.msra.mxu0 %v524
    %1150 = vmatprep.subr.mxu0 0.0
    %1151 = vmatpush1.msra.mxu0 %v525
    %1152 = vmatprep.subr.mxu0 0.0
    %1153 = vmatpush1.msra.mxu0 %v526
    %1154 = vmatprep.subr.mxu0 0.0
    %1155 = vmatpush1.msra.mxu0 %v527
    %1156 = vmatprep.subr.mxu0 0.0
    %1157 = vmatpush1.msra.mxu0 %v528
    %1158 = vmatprep.subr.mxu0 0.0
    %1159 = vmatpush1.msra.mxu0 %v529
    %1160 = vmatprep.subr.mxu0 0.0
    %1161 = vmatpush1.msra.mxu0 %v530
    %1162 = vmatprep.subr.mxu0 0.0
    %1163 = vmatpush1.msra.mxu0 %v531
    %1164 = vmatprep.subr.mxu0 0.0
    %1165 = vmatpush1.msra.mxu0 %v532
    %1166 = vmatprep.subr.mxu0 0.0
    %1167 = vmatpush1.msra.mxu0 %v533
    %1168 = vmatprep.subr.mxu0 0.0
    %1169 = vmatpush1.msra.mxu0 %v534
    %1170 = vmatprep.subr.mxu0 0.0
    %1171 = vmatpush1.msra.mxu0 %v535
    %1172 = vmatprep.subr.mxu0 0.0
    %1173 = vmatpush1.msra.mxu0 %v536
    %1174 = vmatprep.subr.mxu0 0.0
    %1175 = vmatpush1.msra.mxu0 %v537
    %1176 = vmatprep.subr.mxu0 0.0
    %1177 = vmatpush1.msra.mxu0 %v538
    %1178 = vmatprep.subr.mxu0 0.0
    %1179 = vmatpush1.msra.mxu0 %v539
    %1180 = vmatprep.subr.mxu0 0.0
    %1181 = vmatpush1.msra.mxu0 %v540
    %1182 = vmatprep.subr.mxu0 0.0
    %1183 = vmatpush1.msra.mxu0 %v541
    %1184 = vmatprep.mubr.f32.mxu0 %v613
    %1185 = vmatmul.mubr.f32.gmra.mrb[0].mxu0 %v611
    %v1186 = vpop.f32.mrb[0].mxu0
    %v1187 = vadd.f32 %v1117, %v1186
    %v1188 = vpop.f32.mrb[0].mxu0
    %1189 = vdwg.mxu0
    %v1190 = vmul.f32 %v1187, 2.0
    %v1192 = vlaneseq
    %v1193 = vshrl.u32 %v1192, 7
    %v1194 = vsub.s32 0, %v1193
    %v1195 = vrot.slane %v281, %v1194
    %v1197 = vsub.f32 %v1195, %v1190
    %v1198 = vlaneseq
    %v1199 = vand.u32 %v1198, 127
    %vm1200 = vcmask 74752
    %v1201 = vsel %vm1200, %v1197, inf
    %1202 = vmin.xlane.f32.xlu0 %v1201
    %v1203 = vpop.xlane.xlu0 %1202
    %vm1204 = vcmp.eq.f32.partialorder %v1197, %v1203
    %v1205 = vsel %vm1204, %v1199, 10
    %v1206 = vsel %vm1200, %v1205, 2147483647
    %v1207 = vand.u32 %v1206, 65535
    %v1208 = vshra.s32 %v1206, 16
    %v1209 = vcvt.s32.f32 %v1207
    %v1210 = vcvt.s32.f32 %v1208
    %1211 = vmin.xlane.f32.xlu0 %v1210
    %v1212 = vpop.xlane.xlu0 %1211
    %vm1213 = vcmp.eq.f32.partialorder %v1210, %v1212
    %v1214 = vsel %vm1213, %v1209, inf
    %1215 = vmin.xlane.f32.xlu0 %v1214
    %v1216 = vpop.xlane.xlu0 %1215
    %v1217 = vcvt.f32.s32 %v1216
    %v1218 = vcvt.f32.s32 %v1212
    %v1219 = vshll.u32 %v1218, 16
    %v1220 = vadd.s32 %v1219, %v1217
    %1221 = vxpose.xlu0.b32.start [1/16] %v1220, 128
    %1222 = vxpose.xlu0.b32.cont [2/16] 0, 128
    %1223 = vxpose.xlu0.b32.cont [3/16] 0, 128
    %1224 = vxpose.xlu0.b32.cont [4/16] 0, 128
    %1225 = vxpose.xlu0.b32.cont [5/16] 0, 128
    %1226 = vxpose.xlu0.b32.cont [6/16] 0, 128
    %1227 = vxpose.xlu0.b32.cont [7/16] 0, 128
    %1228 = vxpose.xlu0.b32.cont [8/16] 0, 128
    %1229 = vxpose.xlu0.b32.cont [9/16] 0, 128
    %1230 = vxpose.xlu0.b32.cont [10/16] 0, 128
    %1231 = vxpose.xlu0.b32.cont [11/16] 0, 128
    %1232 = vxpose.xlu0.b32.cont [12/16] 0, 128
    %1233 = vxpose.xlu0.b32.cont [13/16] 0, 128
    %1234 = vxpose.xlu0.b32.cont [14/16] 0, 128
    %1235 = vxpose.xlu0.b32.cont [15/16] 0, 128
    %1236 = vxpose.xlu0.b32.end [16/16] 0, 128
    %v1237 = vpop.trf.xlu0
    %v1238 = vpop.trf.xlu0
    %v1239 = vpop.trf.xlu0
    %v1240 = vpop.trf.xlu0
    %v1241 = vpop.trf.xlu0
    %v1242 = vpop.trf.xlu0
    %v1243 = vpop.trf.xlu0
    %v1244 = vpop.trf.xlu0
    %v1245 = vpop.trf.xlu0
    %v1246 = vpop.trf.xlu0
    %v1247 = vpop.trf.xlu0
    %v1248 = vpop.trf.xlu0
    %v1249 = vpop.trf.xlu0
    %v1250 = vpop.trf.xlu0
    %v1251 = vpop.trf.xlu0
    %v1252 = vpop.trf.xlu0
    %vm1253 = vcmask 8192
    %1254 = vst.msk [vmem:[#allocation4] sm:$0x1] %vm1253, %v1237
    // Predicated region
    $region22: #{clustering_model_forward.1} parent=1 // pred_check
      _
    $region23: #{clustering_model_forward.1} parent=1 // pred_check_branch
      %1256 = sbr.rel (0) target = $region25
    $region24: #{clustering_model_forward.1} parent=1 // pred_region
      %s1258 = ssub.s32 16, 16
      %1259 = vsyncadd [#allocation5], %s1258
      %s1261 = sshll.u32 [#allocation4], 4
      %s1262 = int_to_ptr.vmem [resolvable:$true] %s1261
      %1264 = dma.vmem_to_hbm [thread:$0]  %s1262, 16, %s5, [#allocation5]
    $region25: #{clustering_model_forward.1} parent=1 // pred_fallthru
      _
    // Predicated region
    $region26: #{clustering_model_forward.1} parent=1 // pred_check
      _
    $region27: #{clustering_model_forward.1} parent=1 // pred_check_branch
      %1266 = sbr.rel (0) target = $region29
    $region28: #{clustering_model_forward.1} parent=1 // pred_region
      %1267 = dma.done [#allocation5], 16
    $region29: #{clustering_model_forward.1} parent=1 // pred_fallthru
      _
    %1268 = vsyncpa [#allocation5], 1

</llo_original>
